<compile_context>
chip_gen: v7x
topology: tpu7x:2x2x1
jax: 0.10.0
libtpu: 0.0.40
codegen_flags: <defaults>
</compile_context>

<pallas_src>
import jax
import jax.numpy as jnp
from jax.experimental import pallas as pl
from jax.experimental.pallas import tpu as pltpu


# ----------------------------- Pallas kernel ------------------------------ #

def fused_gcn_kernel(n_id_ref,      # SMEM [n_sub] int32            (scalar prefetch)
                     emb_ref,       # HBM  [num_node, emb_dim] f32  (memory_space=ANY)
                     a_ref,         # VMEM [n_sub, n_sub] f32       normalized adjacency
                     w_ref,         # VMEM [L, d_pad, d_pad] bf16   stacked weights
                     b_ref,         # VMEM [L, 1, d_pad] f32        stacked biases
                     o_ref,         # VMEM [n_sub, d_pad] f32       output
                     xg_ref,        # VMEM [n_sub, emb_dim] f32     gather landing buffer
                     gather_sem):   # DMA semaphore (1,) shared by all row copies
    n_sub, emb_dim = xg_ref.shape
    num_layers = w_ref.shape[0]

    # ---- fused embedding gather: one row DMA per sampled node ------------- #
    # Build all descriptors first (every SMEM n_id read happens before any DMA
    # is in flight), then start them all so the copies overlap each other; all
    # copies signal the same DMA semaphore.
    row_copies = [
        pltpu.make_async_copy(
            emb_ref.at[pl.ds(n_id_ref[r], 1)],   # (1, emb_dim) row in HBM
            xg_ref.at[pl.ds(r, 1)],              # (1, emb_dim) row in VMEM
            gather_sem.at[0],
        )
        for r in range(n_sub)
    ]
    for cp in row_copies:
        cp.start()
    for cp in row_copies:
        cp.wait()
    # TODO(synk): single aggregate wait on gather_sem (see header note).

    # ---- all GCN layers with a_hat, x and weights resident in VMEM -------- #
    a = a_ref[...]                       # f32 [n_sub, n_sub]
    x = xg_ref[...]                      # f32 [n_sub, emb_dim]  (layer-0 input)
    for l in range(num_layers):          # small static L -> unrolled
        if l > 0:                        # ReLU before every conv but the first
            x = jnp.maximum(x, 0.0)
        k_dim = x.shape[1]               # emb_dim for layer 0, d_pad afterwards
        # Feature transform: bf16 x bf16 on the MXU, f32 accumulation.  Only
        # the k_dim real contraction rows of the padded weights are fed.
        xw = jnp.dot(x.astype(jnp.bfloat16), w_ref[l][:k_dim, :],
                     preferred_element_type=jnp.float32)   # f32 [n_sub, d_pad]
        # Aggregation: f32 x f32, f32 accumulate (a_hat kept f32 at small n_sub).
        x = jnp.dot(a, xw, preferred_element_type=jnp.float32) + b_ref[l]
    o_ref[...] = x.astype(o_ref.dtype)


def meta_gcn_fused(emb, n_id, a_hat, w_stack, b_stack):
    """One pallas_call running the embedding gather + all GCN layers."""
    num_node, emb_dim = emb.shape
    num_layers, d_pad, _ = w_stack.shape
    n_sub = a_hat.shape[0]

    flops = num_layers * (2 * n_sub * d_pad * d_pad + 2 * n_sub * n_sub * d_pad)
    bytes_accessed = (n_sub * 4                          # n_id (SMEM prefetch)
                      + n_sub * emb_dim * 4              # gathered embedding rows
                      + n_sub * n_sub * 4                # f32 a_hat
                      + num_layers * d_pad * d_pad * 2   # bf16 weight stack
                      + num_layers * d_pad * 4           # f32 biases
                      + n_sub * d_pad * 4)               # f32 output

    return pl.pallas_call(
        fused_gcn_kernel,
        out_shape=jax.ShapeDtypeStruct((n_sub, d_pad), jnp.float32),
        grid_spec=pltpu.PrefetchScalarGridSpec(
            num_scalar_prefetch=1,                 # n_id -> SMEM
            grid=(1,),
            in_specs=[
                pl.BlockSpec(memory_space=pl.ANY),                     # emb stays in HBM
                pl.BlockSpec((n_sub, n_sub), lambda i, nid: (0, 0)),   # a_hat
                pl.BlockSpec((num_layers, d_pad, d_pad),
                             lambda i, nid: (0, 0, 0)),                # bf16 weights
                pl.BlockSpec((num_layers, 1, d_pad),
                             lambda i, nid: (0, 0, 0)),                # biases
            ],
            out_specs=pl.BlockSpec((n_sub, d_pad), lambda i, nid: (0, 0)),
            scratch_shapes=[
                pltpu.VMEM((n_sub, emb_dim), jnp.float32),             # gathered x
                pltpu.SemaphoreType.DMA((1,)),                         # shared gather sem
            ],
        ),
        compiler_params=pltpu.CompilerParams(
            dimension_semantics=("arbitrary",),
            # Fits every generation's default scoped VMEM (incl. v5e's 16 MiB);
            # the future tiled large-N path must re-derive this per generation.
            vmem_limit_bytes=16 * 1024 * 1024,
        ),
        cost_estimate=pl.CostEstimate(
            flops=flops, transcendentals=0, bytes_accessed=bytes_accessed),
    )(n_id, emb, a_hat, w_stack, b_stack)


# ------------------------------- JAX glue --------------------------------- #

def gcn_norm(edge_index, num_nodes):
    """Dense D^{-1/2}(A+I)D^{-1/2}, matching PyG gcn_norm semantics.

    add_remaining_self_loops: pre-existing self-loop edges are dropped and
    every node gets exactly one self-loop with unit weight.
    """
    src, dst = edge_index[0], edge_index[1]
    w = jnp.where(src == dst, 0.0, 1.0).astype(jnp.float32)
    # TODO(synk): adjacency construction is a data-dependent scatter-add ->
    #   kept in XLA glue rather than the Pallas kernel.
    a = jnp.zeros((num_nodes, num_nodes), jnp.float32).at[dst, src].add(w)
    a = a + jnp.eye(num_nodes, dtype=jnp.float32)
    deg = a.sum(axis=1)
    dinv = jnp.where(deg > 0, jax.lax.rsqrt(deg), 0.0)
    return dinv[:, None] * a * dinv[None, :]          # f32 (bf16 only for big n_sub)


def meta_network_gcn_forward(params, n_id, edge_index):
    n_sub = n_id.shape[0]
    num_node = params["emb"].shape[0]
    a_hat = gcn_norm(edge_index, n_sub)                      # f32 [n_sub, n_sub]
    # Clamp so a bad id can never become an OOB HBM DMA inside the kernel.
    n_id = jnp.clip(n_id.astype(jnp.int32), 0, num_node - 1)
    out_padded = meta_gcn_fused(params["emb"], n_id, a_hat,
                                params["w_stack"], params["b_stack"])
    return out_padded[:, :params["emb_dim"]]                 # strip lane padding


def reference_forward(params, n_id, edge_index):
    """Pure-JAX f32 reference of the PyTorch module forward."""
    x = params["emb"][n_id]
    a = gcn_norm(edge_index, n_id.shape[0])
    for l in range(params["w_ref"].shape[0]):
        if l > 0:
            x = jnp.maximum(x, 0.0)
        x = a @ (x @ params["w_ref"][l]) + params["b_ref"][l]
    return x


# --------------------------- parameter creation ---------------------------- #

def xavier_normal(key, shape):
    fan_in, fan_out = shape[0], shape[1]
    std = (2.0 / (fan_in + fan_out)) ** 0.5
    return std * jax.random.normal(key, shape, dtype=jnp.float32)


def glorot_uniform(key, shape):
    fan_in, fan_out = shape[0], shape[1]
    limit = (6.0 / (fan_in + fan_out)) ** 0.5
    return jax.random.uniform(key, shape, jnp.float32, -limit, limit)


def init_params(key, num_node, emb_dim, num_layers):
    keys = jax.random.split(key, 1 + num_layers)
    emb = xavier_normal(keys[0], (num_node, emb_dim))              # MetaEmb.weight (f32, HBM)
    weights = jnp.stack([glorot_uniform(keys[1 + i], (emb_dim, emb_dim))
                         for i in range(num_layers)])              # MetaGCN.weight
    biases = jnp.zeros((num_layers, emb_dim), jnp.float32)         # MetaGCN.bias (zeros)

    # Zero-pad the feature dim to a multiple of 128 so matmuls / output stores
    # are lane-dense; the embedding table itself is NOT padded (4x fewer
    # gather DMA bytes).  Weights are stored in bf16 for the MXU.
    d_pad = max(128, ((emb_dim + 127) // 128) * 128)
    w_pad = (jnp.zeros((num_layers, d_pad, d_pad), jnp.float32)
             .at[:, :emb_dim, :emb_dim].set(weights))
    b_pad = (jnp.zeros((num_layers, 1, d_pad), jnp.float32)
             .at[:, 0, :emb_dim].set(biases))
    return {
        "emb": emb,                                  # [num_node, emb_dim] f32
        "w_stack": w_pad.astype(jnp.bfloat16),       # [L, d_pad, d_pad] bf16
        "b_stack": b_pad,                            # [L, 1, d_pad] f32
        "w_ref": weights,                            # f32 masters for the reference
        "b_ref": biases,
        "emb_dim": emb_dim,
    }


# ---------------------------------- main ----------------------------------- #

if __name__ == "__main__":
    # args.emb_dim = 32, args.num_layers = 2, num_node = 64
    emb_dim = 32
    num_layers = 2
    num_node = 64
    n_sub = 16          # number of sampled nodes (len(n_id))
    n_edges = 32

    key = jax.random.PRNGKey(0)
    k_param, k_nid, k_edge = jax.random.split(key, 3)

    params = init_params(k_param, num_node, emb_dim, num_layers)

    # n_id: global node ids of the sampled subgraph
    n_id = jax.random.permutation(k_nid, num_node)[:n_sub].astype(jnp.int32)
    # edge_index: [2, E], local indices into the n_id ordering
    edge_index = jax.random.randint(k_edge, (2, n_edges), 0, n_sub,
                                    dtype=jnp.int32)

    out = meta_network_gcn_forward(params, n_id, edge_index)
    out = jax.block_until_ready(out)

    assert out.shape == (n_sub, emb_dim)
    assert bool(jnp.all(jnp.isfinite(out)))

    # Only the x @ W inputs are bf16 (f32 accumulate, f32 aggregation), so the
    # tolerance is tighter than the previous all-bf16 version.
    ref = reference_forward(params, n_id, edge_index)
    max_err = float(jnp.max(jnp.abs(out - ref)))
    assert jnp.allclose(out, ref, atol=1e-2, rtol=1e-2), max_err

    print("KERNEL_OK")
</pallas_src>

<mosaic_0001>
module attributes {stable_mosaic.version = 11 : i64} {
  func.func @fused_gcn_kernel(%arg0: i32, %arg1: memref<16xi32, #tpu.memory_space<smem>>, %arg2: memref<64x32xf32, #tpu.memory_space<any>>, %arg3: memref<16x16xf32, #tpu.memory_space<vmem>>, %arg4: memref<2x128x128xbf16, #tpu.memory_space<vmem>>, %arg5: memref<2x1x128xf32, #tpu.memory_space<vmem>>, %arg6: memref<16x128xf32, #tpu.memory_space<vmem>>, %arg7: memref<16x32xf32, #tpu.memory_space<vmem>>, %arg8: memref<1x!tpu.dma_semaphore, #tpu.memory_space<semaphore_mem>>) attributes {dimension_semantics = [#tpu.dimension_semantics<arbitrary>], iteration_bounds = array<i64: 1>, scalar_prefetch = 1 : i64, scratch_operands = 2 : i64, tpu.core_type = #tpu.core_type<tc>, window_params = [{}, {pipeline_mode = #tpu.pipeline_mode<synchronous>, transform_indices = @transform_1, window_bounds = array<i64: 16, 16>}, {pipeline_mode = #tpu.pipeline_mode<synchronous>, transform_indices = @transform_2, window_bounds = array<i64: 2, 128, 128>}, {pipeline_mode = #tpu.pipeline_mode<synchronous>, transform_indices = @transform_3, window_bounds = array<i64: 2, 1, 128>}, {pipeline_mode = #tpu.pipeline_mode<synchronous>, transform_indices = @transform_4, window_bounds = array<i64: 16, 128>}]} {
    %c0 = arith.constant 0 : index
    %0 = memref.load %arg1[%c0] : memref<16xi32, #tpu.memory_space<smem>>
    %c1 = arith.constant 1 : index
    %1 = memref.load %arg1[%c1] : memref<16xi32, #tpu.memory_space<smem>>
    %c2 = arith.constant 2 : index
    %2 = memref.load %arg1[%c2] : memref<16xi32, #tpu.memory_space<smem>>
    %c3 = arith.constant 3 : index
    %3 = memref.load %arg1[%c3] : memref<16xi32, #tpu.memory_space<smem>>
    %c4 = arith.constant 4 : index
    %4 = memref.load %arg1[%c4] : memref<16xi32, #tpu.memory_space<smem>>
    %c5 = arith.constant 5 : index
    %5 = memref.load %arg1[%c5] : memref<16xi32, #tpu.memory_space<smem>>
    %c6 = arith.constant 6 : index
    %6 = memref.load %arg1[%c6] : memref<16xi32, #tpu.memory_space<smem>>
    %c7 = arith.constant 7 : index
    %7 = memref.load %arg1[%c7] : memref<16xi32, #tpu.memory_space<smem>>
    %c8 = arith.constant 8 : index
    %8 = memref.load %arg1[%c8] : memref<16xi32, #tpu.memory_space<smem>>
    %c9 = arith.constant 9 : index
    %9 = memref.load %arg1[%c9] : memref<16xi32, #tpu.memory_space<smem>>
    %c10 = arith.constant 10 : index
    %10 = memref.load %arg1[%c10] : memref<16xi32, #tpu.memory_space<smem>>
    %c11 = arith.constant 11 : index
    %11 = memref.load %arg1[%c11] : memref<16xi32, #tpu.memory_space<smem>>
    %c12 = arith.constant 12 : index
    %12 = memref.load %arg1[%c12] : memref<16xi32, #tpu.memory_space<smem>>
    %c13 = arith.constant 13 : index
    %13 = memref.load %arg1[%c13] : memref<16xi32, #tpu.memory_space<smem>>
    %c14 = arith.constant 14 : index
    %14 = memref.load %arg1[%c14] : memref<16xi32, #tpu.memory_space<smem>>
    %c15 = arith.constant 15 : index
    %15 = memref.load %arg1[%c15] : memref<16xi32, #tpu.memory_space<smem>>
    %c0_i32 = arith.constant 0 : i32
    %c0_i32_0 = arith.constant 0 : i32
    %16 = tpu.memref_slice %arg2[%0, %c0_i32_0] : memref<64x32xf32, #tpu.memory_space<any>> -> memref<1x32xf32, #tpu.memory_space<any>>
    %c0_i32_1 = arith.constant 0 : i32
    %c0_i32_2 = arith.constant 0 : i32
    %17 = tpu.memref_slice %arg7[%c0_i32_1, %c0_i32_2] : memref<16x32xf32, #tpu.memory_space<vmem>> -> memref<1x32xf32, #tpu.memory_space<vmem>>
    %18 = tpu.memref_slice %arg8[%c0_i32] : memref<1x!tpu.dma_semaphore, #tpu.memory_space<semaphore_mem>> -> memref<1x!tpu.dma_semaphore, #tpu.memory_space<semaphore_mem>>
    %19 = tpu.memref_squeeze %18 : memref<1x!tpu.dma_semaphore, #tpu.memory_space<semaphore_mem>> -> memref<!tpu.dma_semaphore, #tpu.memory_space<semaphore_mem>>
    tpu.enqueue_dma source(%16 : memref<1x32xf32, #tpu.memory_space<any>>) target(%17 : memref<1x32xf32, #tpu.memory_space<vmem>>) target_semaphore(%19 : memref<!tpu.dma_semaphore, #tpu.memory_space<semaphore_mem>>)
    %c0_i32_3 = arith.constant 0 : i32
    %c0_i32_4 = arith.constant 0 : i32
    %20 = tpu.memref_slice %arg2[%1, %c0_i32_4] : memref<64x32xf32, #tpu.memory_space<any>> -> memref<1x32xf32, #tpu.memory_space<any>>
    %c1_i32 = arith.constant 1 : i32
    %c0_i32_5 = arith.constant 0 : i32
    %21 = tpu.memref_slice %arg7[%c1_i32, %c0_i32_5] : memref<16x32xf32, #tpu.memory_space<vmem>> -> memref<1x32xf32, #tpu.memory_space<vmem>>
    %22 = tpu.memref_slice %arg8[%c0_i32_3] : memref<1x!tpu.dma_semaphore, #tpu.memory_space<semaphore_mem>> -> memref<1x!tpu.dma_semaphore, #tpu.memory_space<semaphore_mem>>
    %23 = tpu.memref_squeeze %22 : memref<1x!tpu.dma_semaphore, #tpu.memory_space<semaphore_mem>> -> memref<!tpu.dma_semaphore, #tpu.memory_space<semaphore_mem>>
    tpu.enqueue_dma source(%20 : memref<1x32xf32, #tpu.memory_space<any>>) target(%21 : memref<1x32xf32, #tpu.memory_space<vmem>>) target_semaphore(%23 : memref<!tpu.dma_semaphore, #tpu.memory_space<semaphore_mem>>)
    %c0_i32_6 = arith.constant 0 : i32
    %c0_i32_7 = arith.constant 0 : i32
    %24 = tpu.memref_slice %arg2[%2, %c0_i32_7] : memref<64x32xf32, #tpu.memory_space<any>> -> memref<1x32xf32, #tpu.memory_space<any>>
    %c2_i32 = arith.constant 2 : i32
    %c0_i32_8 = arith.constant 0 : i32
    %25 = tpu.memref_slice %arg7[%c2_i32, %c0_i32_8] : memref<16x32xf32, #tpu.memory_space<vmem>> -> memref<1x32xf32, #tpu.memory_space<vmem>>
    %26 = tpu.memref_slice %arg8[%c0_i32_6] : memref<1x!tpu.dma_semaphore, #tpu.memory_space<semaphore_mem>> -> memref<1x!tpu.dma_semaphore, #tpu.memory_space<semaphore_mem>>
    %27 = tpu.memref_squeeze %26 : memref<1x!tpu.dma_semaphore, #tpu.memory_space<semaphore_mem>> -> memref<!tpu.dma_semaphore, #tpu.memory_space<semaphore_mem>>
    tpu.enqueue_dma source(%24 : memref<1x32xf32, #tpu.memory_space<any>>) target(%25 : memref<1x32xf32, #tpu.memory_space<vmem>>) target_semaphore(%27 : memref<!tpu.dma_semaphore, #tpu.memory_space<semaphore_mem>>)
    %c0_i32_9 = arith.constant 0 : i32
    %c0_i32_10 = arith.constant 0 : i32
    %28 = tpu.memref_slice %arg2[%3, %c0_i32_10] : memref<64x32xf32, #tpu.memory_space<any>> -> memref<1x32xf32, #tpu.memory_space<any>>
    %c3_i32 = arith.constant 3 : i32
    %c0_i32_11 = arith.constant 0 : i32
    %29 = tpu.memref_slice %arg7[%c3_i32, %c0_i32_11] : memref<16x32xf32, #tpu.memory_space<vmem>> -> memref<1x32xf32, #tpu.memory_space<vmem>>
    %30 = tpu.memref_slice %arg8[%c0_i32_9] : memref<1x!tpu.dma_semaphore, #tpu.memory_space<semaphore_mem>> -> memref<1x!tpu.dma_semaphore, #tpu.memory_space<semaphore_mem>>
    %31 = tpu.memref_squeeze %30 : memref<1x!tpu.dma_semaphore, #tpu.memory_space<semaphore_mem>> -> memref<!tpu.dma_semaphore, #tpu.memory_space<semaphore_mem>>
    tpu.enqueue_dma source(%28 : memref<1x32xf32, #tpu.memory_space<any>>) target(%29 : memref<1x32xf32, #tpu.memory_space<vmem>>) target_semaphore(%31 : memref<!tpu.dma_semaphore, #tpu.memory_space<semaphore_mem>>)
    %c0_i32_12 = arith.constant 0 : i32
    %c0_i32_13 = arith.constant 0 : i32
    %32 = tpu.memref_slice %arg2[%4, %c0_i32_13] : memref<64x32xf32, #tpu.memory_space<any>> -> memref<1x32xf32, #tpu.memory_space<any>>
    %c4_i32 = arith.constant 4 : i32
    %c0_i32_14 = arith.constant 0 : i32
    %33 = tpu.memref_slice %arg7[%c4_i32, %c0_i32_14] : memref<16x32xf32, #tpu.memory_space<vmem>> -> memref<1x32xf32, #tpu.memory_space<vmem>>
    %34 = tpu.memref_slice %arg8[%c0_i32_12] : memref<1x!tpu.dma_semaphore, #tpu.memory_space<semaphore_mem>> -> memref<1x!tpu.dma_semaphore, #tpu.memory_space<semaphore_mem>>
    %35 = tpu.memref_squeeze %34 : memref<1x!tpu.dma_semaphore, #tpu.memory_space<semaphore_mem>> -> memref<!tpu.dma_semaphore, #tpu.memory_space<semaphore_mem>>
    tpu.enqueue_dma source(%32 : memref<1x32xf32, #tpu.memory_space<any>>) target(%33 : memref<1x32xf32, #tpu.memory_space<vmem>>) target_semaphore(%35 : memref<!tpu.dma_semaphore, #tpu.memory_space<semaphore_mem>>)
    %c0_i32_15 = arith.constant 0 : i32
    %c0_i32_16 = arith.constant 0 : i32
    %36 = tpu.memref_slice %arg2[%5, %c0_i32_16] : memref<64x32xf32, #tpu.memory_space<any>> -> memref<1x32xf32, #tpu.memory_space<any>>
    %c5_i32 = arith.constant 5 : i32
    %c0_i32_17 = arith.constant 0 : i32
    %37 = tpu.memref_slice %arg7[%c5_i32, %c0_i32_17] : memref<16x32xf32, #tpu.memory_space<vmem>> -> memref<1x32xf32, #tpu.memory_space<vmem>>
    %38 = tpu.memref_slice %arg8[%c0_i32_15] : memref<1x!tpu.dma_semaphore, #tpu.memory_space<semaphore_mem>> -> memref<1x!tpu.dma_semaphore, #tpu.memory_space<semaphore_mem>>
    %39 = tpu.memref_squeeze %38 : memref<1x!tpu.dma_semaphore, #tpu.memory_space<semaphore_mem>> -> memref<!tpu.dma_semaphore, #tpu.memory_space<semaphore_mem>>
    tpu.enqueue_dma source(%36 : memref<1x32xf32, #tpu.memory_space<any>>) target(%37 : memref<1x32xf32, #tpu.memory_space<vmem>>) target_semaphore(%39 : memref<!tpu.dma_semaphore, #tpu.memory_space<semaphore_mem>>)
    %c0_i32_18 = arith.constant 0 : i32
    %c0_i32_19 = arith.constant 0 : i32
    %40 = tpu.memref_slice %arg2[%6, %c0_i32_19] : memref<64x32xf32, #tpu.memory_space<any>> -> memref<1x32xf32, #tpu.memory_space<any>>
    %c6_i32 = arith.constant 6 : i32
    %c0_i32_20 = arith.constant 0 : i32
    %41 = tpu.memref_slice %arg7[%c6_i32, %c0_i32_20] : memref<16x32xf32, #tpu.memory_space<vmem>> -> memref<1x32xf32, #tpu.memory_space<vmem>>
    %42 = tpu.memref_slice %arg8[%c0_i32_18] : memref<1x!tpu.dma_semaphore, #tpu.memory_space<semaphore_mem>> -> memref<1x!tpu.dma_semaphore, #tpu.memory_space<semaphore_mem>>
    %43 = tpu.memref_squeeze %42 : memref<1x!tpu.dma_semaphore, #tpu.memory_space<semaphore_mem>> -> memref<!tpu.dma_semaphore, #tpu.memory_space<semaphore_mem>>
    tpu.enqueue_dma source(%40 : memref<1x32xf32, #tpu.memory_space<any>>) target(%41 : memref<1x32xf32, #tpu.memory_space<vmem>>) target_semaphore(%43 : memref<!tpu.dma_semaphore, #tpu.memory_space<semaphore_mem>>)
    %c0_i32_21 = arith.constant 0 : i32
    %c0_i32_22 = arith.constant 0 : i32
    %44 = tpu.memref_slice %arg2[%7, %c0_i32_22] : memref<64x32xf32, #tpu.memory_space<any>> -> memref<1x32xf32, #tpu.memory_space<any>>
    %c7_i32 = arith.constant 7 : i32
    %c0_i32_23 = arith.constant 0 : i32
    %45 = tpu.memref_slice %arg7[%c7_i32, %c0_i32_23] : memref<16x32xf32, #tpu.memory_space<vmem>> -> memref<1x32xf32, #tpu.memory_space<vmem>>
    %46 = tpu.memref_slice %arg8[%c0_i32_21] : memref<1x!tpu.dma_semaphore, #tpu.memory_space<semaphore_mem>> -> memref<1x!tpu.dma_semaphore, #tpu.memory_space<semaphore_mem>>
    %47 = tpu.memref_squeeze %46 : memref<1x!tpu.dma_semaphore, #tpu.memory_space<semaphore_mem>> -> memref<!tpu.dma_semaphore, #tpu.memory_space<semaphore_mem>>
    tpu.enqueue_dma source(%44 : memref<1x32xf32, #tpu.memory_space<any>>) target(%45 : memref<1x32xf32, #tpu.memory_space<vmem>>) target_semaphore(%47 : memref<!tpu.dma_semaphore, #tpu.memory_space<semaphore_mem>>)
    %c0_i32_24 = arith.constant 0 : i32
    %c0_i32_25 = arith.constant 0 : i32
    %48 = tpu.memref_slice %arg2[%8, %c0_i32_25] : memref<64x32xf32, #tpu.memory_space<any>> -> memref<1x32xf32, #tpu.memory_space<any>>
    %c8_i32 = arith.constant 8 : i32
    %c0_i32_26 = arith.constant 0 : i32
    %49 = tpu.memref_slice %arg7[%c8_i32, %c0_i32_26] : memref<16x32xf32, #tpu.memory_space<vmem>> -> memref<1x32xf32, #tpu.memory_space<vmem>>
    %50 = tpu.memref_slice %arg8[%c0_i32_24] : memref<1x!tpu.dma_semaphore, #tpu.memory_space<semaphore_mem>> -> memref<1x!tpu.dma_semaphore, #tpu.memory_space<semaphore_mem>>
    %51 = tpu.memref_squeeze %50 : memref<1x!tpu.dma_semaphore, #tpu.memory_space<semaphore_mem>> -> memref<!tpu.dma_semaphore, #tpu.memory_space<semaphore_mem>>
    tpu.enqueue_dma source(%48 : memref<1x32xf32, #tpu.memory_space<any>>) target(%49 : memref<1x32xf32, #tpu.memory_space<vmem>>) target_semaphore(%51 : memref<!tpu.dma_semaphore, #tpu.memory_space<semaphore_mem>>)
    %c0_i32_27 = arith.constant 0 : i32
    %c0_i32_28 = arith.constant 0 : i32
    %52 = tpu.memref_slice %arg2[%9, %c0_i32_28] : memref<64x32xf32, #tpu.memory_space<any>> -> memref<1x32xf32, #tpu.memory_space<any>>
    %c9_i32 = arith.constant 9 : i32
    %c0_i32_29 = arith.constant 0 : i32
    %53 = tpu.memref_slice %arg7[%c9_i32, %c0_i32_29] : memref<16x32xf32, #tpu.memory_space<vmem>> -> memref<1x32xf32, #tpu.memory_space<vmem>>
    %54 = tpu.memref_slice %arg8[%c0_i32_27] : memref<1x!tpu.dma_semaphore, #tpu.memory_space<semaphore_mem>> -> memref<1x!tpu.dma_semaphore, #tpu.memory_space<semaphore_mem>>
    %55 = tpu.memref_squeeze %54 : memref<1x!tpu.dma_semaphore, #tpu.memory_space<semaphore_mem>> -> memref<!tpu.dma_semaphore, #tpu.memory_space<semaphore_mem>>
    tpu.enqueue_dma source(%52 : memref<1x32xf32, #tpu.memory_space<any>>) target(%53 : memref<1x32xf32, #tpu.memory_space<vmem>>) target_semaphore(%55 : memref<!tpu.dma_semaphore, #tpu.memory_space<semaphore_mem>>)
    %c0_i32_30 = arith.constant 0 : i32
    %c0_i32_31 = arith.constant 0 : i32
    %56 = tpu.memref_slice %arg2[%10, %c0_i32_31] : memref<64x32xf32, #tpu.memory_space<any>> -> memref<1x32xf32, #tpu.memory_space<any>>
    %c10_i32 = arith.constant 10 : i32
    %c0_i32_32 = arith.constant 0 : i32
    %57 = tpu.memref_slice %arg7[%c10_i32, %c0_i32_32] : memref<16x32xf32, #tpu.memory_space<vmem>> -> memref<1x32xf32, #tpu.memory_space<vmem>>
    %58 = tpu.memref_slice %arg8[%c0_i32_30] : memref<1x!tpu.dma_semaphore, #tpu.memory_space<semaphore_mem>> -> memref<1x!tpu.dma_semaphore, #tpu.memory_space<semaphore_mem>>
    %59 = tpu.memref_squeeze %58 : memref<1x!tpu.dma_semaphore, #tpu.memory_space<semaphore_mem>> -> memref<!tpu.dma_semaphore, #tpu.memory_space<semaphore_mem>>
    tpu.enqueue_dma source(%56 : memref<1x32xf32, #tpu.memory_space<any>>) target(%57 : memref<1x32xf32, #tpu.memory_space<vmem>>) target_semaphore(%59 : memref<!tpu.dma_semaphore, #tpu.memory_space<semaphore_mem>>)
    %c0_i32_33 = arith.constant 0 : i32
    %c0_i32_34 = arith.constant 0 : i32
    %60 = tpu.memref_slice %arg2[%11, %c0_i32_34] : memref<64x32xf32, #tpu.memory_space<any>> -> memref<1x32xf32, #tpu.memory_space<any>>
    %c11_i32 = arith.constant 11 : i32
    %c0_i32_35 = arith.constant 0 : i32
    %61 = tpu.memref_slice %arg7[%c11_i32, %c0_i32_35] : memref<16x32xf32, #tpu.memory_space<vmem>> -> memref<1x32xf32, #tpu.memory_space<vmem>>
    %62 = tpu.memref_slice %arg8[%c0_i32_33] : memref<1x!tpu.dma_semaphore, #tpu.memory_space<semaphore_mem>> -> memref<1x!tpu.dma_semaphore, #tpu.memory_space<semaphore_mem>>
    %63 = tpu.memref_squeeze %62 : memref<1x!tpu.dma_semaphore, #tpu.memory_space<semaphore_mem>> -> memref<!tpu.dma_semaphore, #tpu.memory_space<semaphore_mem>>
    tpu.enqueue_dma source(%60 : memref<1x32xf32, #tpu.memory_space<any>>) target(%61 : memref<1x32xf32, #tpu.memory_space<vmem>>) target_semaphore(%63 : memref<!tpu.dma_semaphore, #tpu.memory_space<semaphore_mem>>)
    %c0_i32_36 = arith.constant 0 : i32
    %c0_i32_37 = arith.constant 0 : i32
    %64 = tpu.memref_slice %arg2[%12, %c0_i32_37] : memref<64x32xf32, #tpu.memory_space<any>> -> memref<1x32xf32, #tpu.memory_space<any>>
    %c12_i32 = arith.constant 12 : i32
    %c0_i32_38 = arith.constant 0 : i32
    %65 = tpu.memref_slice %arg7[%c12_i32, %c0_i32_38] : memref<16x32xf32, #tpu.memory_space<vmem>> -> memref<1x32xf32, #tpu.memory_space<vmem>>
    %66 = tpu.memref_slice %arg8[%c0_i32_36] : memref<1x!tpu.dma_semaphore, #tpu.memory_space<semaphore_mem>> -> memref<1x!tpu.dma_semaphore, #tpu.memory_space<semaphore_mem>>
    %67 = tpu.memref_squeeze %66 : memref<1x!tpu.dma_semaphore, #tpu.memory_space<semaphore_mem>> -> memref<!tpu.dma_semaphore, #tpu.memory_space<semaphore_mem>>
    tpu.enqueue_dma source(%64 : memref<1x32xf32, #tpu.memory_space<any>>) target(%65 : memref<1x32xf32, #tpu.memory_space<vmem>>) target_semaphore(%67 : memref<!tpu.dma_semaphore, #tpu.memory_space<semaphore_mem>>)
    %c0_i32_39 = arith.constant 0 : i32
    %c0_i32_40 = arith.constant 0 : i32
    %68 = tpu.memref_slice %arg2[%13, %c0_i32_40] : memref<64x32xf32, #tpu.memory_space<any>> -> memref<1x32xf32, #tpu.memory_space<any>>
    %c13_i32 = arith.constant 13 : i32
    %c0_i32_41 = arith.constant 0 : i32
    %69 = tpu.memref_slice %arg7[%c13_i32, %c0_i32_41] : memref<16x32xf32, #tpu.memory_space<vmem>> -> memref<1x32xf32, #tpu.memory_space<vmem>>
    %70 = tpu.memref_slice %arg8[%c0_i32_39] : memref<1x!tpu.dma_semaphore, #tpu.memory_space<semaphore_mem>> -> memref<1x!tpu.dma_semaphore, #tpu.memory_space<semaphore_mem>>
    %71 = tpu.memref_squeeze %70 : memref<1x!tpu.dma_semaphore, #tpu.memory_space<semaphore_mem>> -> memref<!tpu.dma_semaphore, #tpu.memory_space<semaphore_mem>>
    tpu.enqueue_dma source(%68 : memref<1x32xf32, #tpu.memory_space<any>>) target(%69 : memref<1x32xf32, #tpu.memory_space<vmem>>) target_semaphore(%71 : memref<!tpu.dma_semaphore, #tpu.memory_space<semaphore_mem>>)
    %c0_i32_42 = arith.constant 0 : i32
    %c0_i32_43 = arith.constant 0 : i32
    %72 = tpu.memref_slice %arg2[%14, %c0_i32_43] : memref<64x32xf32, #tpu.memory_space<any>> -> memref<1x32xf32, #tpu.memory_space<any>>
    %c14_i32 = arith.constant 14 : i32
    %c0_i32_44 = arith.constant 0 : i32
    %73 = tpu.memref_slice %arg7[%c14_i32, %c0_i32_44] : memref<16x32xf32, #tpu.memory_space<vmem>> -> memref<1x32xf32, #tpu.memory_space<vmem>>
    %74 = tpu.memref_slice %arg8[%c0_i32_42] : memref<1x!tpu.dma_semaphore, #tpu.memory_space<semaphore_mem>> -> memref<1x!tpu.dma_semaphore, #tpu.memory_space<semaphore_mem>>
    %75 = tpu.memref_squeeze %74 : memref<1x!tpu.dma_semaphore, #tpu.memory_space<semaphore_mem>> -> memref<!tpu.dma_semaphore, #tpu.memory_space<semaphore_mem>>
    tpu.enqueue_dma source(%72 : memref<1x32xf32, #tpu.memory_space<any>>) target(%73 : memref<1x32xf32, #tpu.memory_space<vmem>>) target_semaphore(%75 : memref<!tpu.dma_semaphore, #tpu.memory_space<semaphore_mem>>)
    %c0_i32_45 = arith.constant 0 : i32
    %c0_i32_46 = arith.constant 0 : i32
    %76 = tpu.memref_slice %arg2[%15, %c0_i32_46] : memref<64x32xf32, #tpu.memory_space<any>> -> memref<1x32xf32, #tpu.memory_space<any>>
    %c15_i32 = arith.constant 15 : i32
    %c0_i32_47 = arith.constant 0 : i32
    %77 = tpu.memref_slice %arg7[%c15_i32, %c0_i32_47] : memref<16x32xf32, #tpu.memory_space<vmem>> -> memref<1x32xf32, #tpu.memory_space<vmem>>
    %78 = tpu.memref_slice %arg8[%c0_i32_45] : memref<1x!tpu.dma_semaphore, #tpu.memory_space<semaphore_mem>> -> memref<1x!tpu.dma_semaphore, #tpu.memory_space<semaphore_mem>>
    %79 = tpu.memref_squeeze %78 : memref<1x!tpu.dma_semaphore, #tpu.memory_space<semaphore_mem>> -> memref<!tpu.dma_semaphore, #tpu.memory_space<semaphore_mem>>
    tpu.enqueue_dma source(%76 : memref<1x32xf32, #tpu.memory_space<any>>) target(%77 : memref<1x32xf32, #tpu.memory_space<vmem>>) target_semaphore(%79 : memref<!tpu.dma_semaphore, #tpu.memory_space<semaphore_mem>>)
    %c0_i32_48 = arith.constant 0 : i32
    %c0_i32_49 = arith.constant 0 : i32
    %80 = tpu.memref_slice %arg2[%0, %c0_i32_49] : memref<64x32xf32, #tpu.memory_space<any>> -> memref<1x32xf32, #tpu.memory_space<any>>
    %c0_i32_50 = arith.constant 0 : i32
    %c0_i32_51 = arith.constant 0 : i32
    %81 = tpu.memref_slice %arg7[%c0_i32_50, %c0_i32_51] : memref<16x32xf32, #tpu.memory_space<vmem>> -> memref<1x32xf32, #tpu.memory_space<vmem>>
    %82 = tpu.memref_slice %arg8[%c0_i32_48] : memref<1x!tpu.dma_semaphore, #tpu.memory_space<semaphore_mem>> -> memref<1x!tpu.dma_semaphore, #tpu.memory_space<semaphore_mem>>
    %83 = tpu.memref_squeeze %82 : memref<1x!tpu.dma_semaphore, #tpu.memory_space<semaphore_mem>> -> memref<!tpu.dma_semaphore, #tpu.memory_space<semaphore_mem>>
    tpu.wait_dma2 semaphore(%83 : memref<!tpu.dma_semaphore, #tpu.memory_space<semaphore_mem>>) src(%80 : memref<1x32xf32, #tpu.memory_space<any>>) dst(%81 : memref<1x32xf32, #tpu.memory_space<vmem>>)
    %c0_i32_52 = arith.constant 0 : i32
    %c0_i32_53 = arith.constant 0 : i32
    %84 = tpu.memref_slice %arg2[%1, %c0_i32_53] : memref<64x32xf32, #tpu.memory_space<any>> -> memref<1x32xf32, #tpu.memory_space<any>>
    %c1_i32_54 = arith.constant 1 : i32
    %c0_i32_55 = arith.constant 0 : i32
    %85 = tpu.memref_slice %arg7[%c1_i32_54, %c0_i32_55] : memref<16x32xf32, #tpu.memory_space<vmem>> -> memref<1x32xf32, #tpu.memory_space<vmem>>
    %86 = tpu.memref_slice %arg8[%c0_i32_52] : memref<1x!tpu.dma_semaphore, #tpu.memory_space<semaphore_mem>> -> memref<1x!tpu.dma_semaphore, #tpu.memory_space<semaphore_mem>>
    %87 = tpu.memref_squeeze %86 : memref<1x!tpu.dma_semaphore, #tpu.memory_space<semaphore_mem>> -> memref<!tpu.dma_semaphore, #tpu.memory_space<semaphore_mem>>
    tpu.wait_dma2 semaphore(%87 : memref<!tpu.dma_semaphore, #tpu.memory_space<semaphore_mem>>) src(%84 : memref<1x32xf32, #tpu.memory_space<any>>) dst(%85 : memref<1x32xf32, #tpu.memory_space<vmem>>)
    %c0_i32_56 = arith.constant 0 : i32
    %c0_i32_57 = arith.constant 0 : i32
    %88 = tpu.memref_slice %arg2[%2, %c0_i32_57] : memref<64x32xf32, #tpu.memory_space<any>> -> memref<1x32xf32, #tpu.memory_space<any>>
    %c2_i32_58 = arith.constant 2 : i32
    %c0_i32_59 = arith.constant 0 : i32
    %89 = tpu.memref_slice %arg7[%c2_i32_58, %c0_i32_59] : memref<16x32xf32, #tpu.memory_space<vmem>> -> memref<1x32xf32, #tpu.memory_space<vmem>>
    %90 = tpu.memref_slice %arg8[%c0_i32_56] : memref<1x!tpu.dma_semaphore, #tpu.memory_space<semaphore_mem>> -> memref<1x!tpu.dma_semaphore, #tpu.memory_space<semaphore_mem>>
    %91 = tpu.memref_squeeze %90 : memref<1x!tpu.dma_semaphore, #tpu.memory_space<semaphore_mem>> -> memref<!tpu.dma_semaphore, #tpu.memory_space<semaphore_mem>>
    tpu.wait_dma2 semaphore(%91 : memref<!tpu.dma_semaphore, #tpu.memory_space<semaphore_mem>>) src(%88 : memref<1x32xf32, #tpu.memory_space<any>>) dst(%89 : memref<1x32xf32, #tpu.memory_space<vmem>>)
    %c0_i32_60 = arith.constant 0 : i32
    %c0_i32_61 = arith.constant 0 : i32
    %92 = tpu.memref_slice %arg2[%3, %c0_i32_61] : memref<64x32xf32, #tpu.memory_space<any>> -> memref<1x32xf32, #tpu.memory_space<any>>
    %c3_i32_62 = arith.constant 3 : i32
    %c0_i32_63 = arith.constant 0 : i32
    %93 = tpu.memref_slice %arg7[%c3_i32_62, %c0_i32_63] : memref<16x32xf32, #tpu.memory_space<vmem>> -> memref<1x32xf32, #tpu.memory_space<vmem>>
    %94 = tpu.memref_slice %arg8[%c0_i32_60] : memref<1x!tpu.dma_semaphore, #tpu.memory_space<semaphore_mem>> -> memref<1x!tpu.dma_semaphore, #tpu.memory_space<semaphore_mem>>
    %95 = tpu.memref_squeeze %94 : memref<1x!tpu.dma_semaphore, #tpu.memory_space<semaphore_mem>> -> memref<!tpu.dma_semaphore, #tpu.memory_space<semaphore_mem>>
    tpu.wait_dma2 semaphore(%95 : memref<!tpu.dma_semaphore, #tpu.memory_space<semaphore_mem>>) src(%92 : memref<1x32xf32, #tpu.memory_space<any>>) dst(%93 : memref<1x32xf32, #tpu.memory_space<vmem>>)
    %c0_i32_64 = arith.constant 0 : i32
    %c0_i32_65 = arith.constant 0 : i32
    %96 = tpu.memref_slice %arg2[%4, %c0_i32_65] : memref<64x32xf32, #tpu.memory_space<any>> -> memref<1x32xf32, #tpu.memory_space<any>>
    %c4_i32_66 = arith.constant 4 : i32
    %c0_i32_67 = arith.constant 0 : i32
    %97 = tpu.memref_slice %arg7[%c4_i32_66, %c0_i32_67] : memref<16x32xf32, #tpu.memory_space<vmem>> -> memref<1x32xf32, #tpu.memory_space<vmem>>
    %98 = tpu.memref_slice %arg8[%c0_i32_64] : memref<1x!tpu.dma_semaphore, #tpu.memory_space<semaphore_mem>> -> memref<1x!tpu.dma_semaphore, #tpu.memory_space<semaphore_mem>>
    %99 = tpu.memref_squeeze %98 : memref<1x!tpu.dma_semaphore, #tpu.memory_space<semaphore_mem>> -> memref<!tpu.dma_semaphore, #tpu.memory_space<semaphore_mem>>
    tpu.wait_dma2 semaphore(%99 : memref<!tpu.dma_semaphore, #tpu.memory_space<semaphore_mem>>) src(%96 : memref<1x32xf32, #tpu.memory_space<any>>) dst(%97 : memref<1x32xf32, #tpu.memory_space<vmem>>)
    %c0_i32_68 = arith.constant 0 : i32
    %c0_i32_69 = arith.constant 0 : i32
    %100 = tpu.memref_slice %arg2[%5, %c0_i32_69] : memref<64x32xf32, #tpu.memory_space<any>> -> memref<1x32xf32, #tpu.memory_space<any>>
    %c5_i32_70 = arith.constant 5 : i32
    %c0_i32_71 = arith.constant 0 : i32
    %101 = tpu.memref_slice %arg7[%c5_i32_70, %c0_i32_71] : memref<16x32xf32, #tpu.memory_space<vmem>> -> memref<1x32xf32, #tpu.memory_space<vmem>>
    %102 = tpu.memref_slice %arg8[%c0_i32_68] : memref<1x!tpu.dma_semaphore, #tpu.memory_space<semaphore_mem>> -> memref<1x!tpu.dma_semaphore, #tpu.memory_space<semaphore_mem>>
    %103 = tpu.memref_squeeze %102 : memref<1x!tpu.dma_semaphore, #tpu.memory_space<semaphore_mem>> -> memref<!tpu.dma_semaphore, #tpu.memory_space<semaphore_mem>>
    tpu.wait_dma2 semaphore(%103 : memref<!tpu.dma_semaphore, #tpu.memory_space<semaphore_mem>>) src(%100 : memref<1x32xf32, #tpu.memory_space<any>>) dst(%101 : memref<1x32xf32, #tpu.memory_space<vmem>>)
    %c0_i32_72 = arith.constant 0 : i32
    %c0_i32_73 = arith.constant 0 : i32
    %104 = tpu.memref_slice %arg2[%6, %c0_i32_73] : memref<64x32xf32, #tpu.memory_space<any>> -> memref<1x32xf32, #tpu.memory_space<any>>
    %c6_i32_74 = arith.constant 6 : i32
    %c0_i32_75 = arith.constant 0 : i32
    %105 = tpu.memref_slice %arg7[%c6_i32_74, %c0_i32_75] : memref<16x32xf32, #tpu.memory_space<vmem>> -> memref<1x32xf32, #tpu.memory_space<vmem>>
    %106 = tpu.memref_slice %arg8[%c0_i32_72] : memref<1x!tpu.dma_semaphore, #tpu.memory_space<semaphore_mem>> -> memref<1x!tpu.dma_semaphore, #tpu.memory_space<semaphore_mem>>
    %107 = tpu.memref_squeeze %106 : memref<1x!tpu.dma_semaphore, #tpu.memory_space<semaphore_mem>> -> memref<!tpu.dma_semaphore, #tpu.memory_space<semaphore_mem>>
    tpu.wait_dma2 semaphore(%107 : memref<!tpu.dma_semaphore, #tpu.memory_space<semaphore_mem>>) src(%104 : memref<1x32xf32, #tpu.memory_space<any>>) dst(%105 : memref<1x32xf32, #tpu.memory_space<vmem>>)
    %c0_i32_76 = arith.constant 0 : i32
    %c0_i32_77 = arith.constant 0 : i32
    %108 = tpu.memref_slice %arg2[%7, %c0_i32_77] : memref<64x32xf32, #tpu.memory_space<any>> -> memref<1x32xf32, #tpu.memory_space<any>>
    %c7_i32_78 = arith.constant 7 : i32
    %c0_i32_79 = arith.constant 0 : i32
    %109 = tpu.memref_slice %arg7[%c7_i32_78, %c0_i32_79] : memref<16x32xf32, #tpu.memory_space<vmem>> -> memref<1x32xf32, #tpu.memory_space<vmem>>
    %110 = tpu.memref_slice %arg8[%c0_i32_76] : memref<1x!tpu.dma_semaphore, #tpu.memory_space<semaphore_mem>> -> memref<1x!tpu.dma_semaphore, #tpu.memory_space<semaphore_mem>>
    %111 = tpu.memref_squeeze %110 : memref<1x!tpu.dma_semaphore, #tpu.memory_space<semaphore_mem>> -> memref<!tpu.dma_semaphore, #tpu.memory_space<semaphore_mem>>
    tpu.wait_dma2 semaphore(%111 : memref<!tpu.dma_semaphore, #tpu.memory_space<semaphore_mem>>) src(%108 : memref<1x32xf32, #tpu.memory_space<any>>) dst(%109 : memref<1x32xf32, #tpu.memory_space<vmem>>)
    %c0_i32_80 = arith.constant 0 : i32
    %c0_i32_81 = arith.constant 0 : i32
    %112 = tpu.memref_slice %arg2[%8, %c0_i32_81] : memref<64x32xf32, #tpu.memory_space<any>> -> memref<1x32xf32, #tpu.memory_space<any>>
    %c8_i32_82 = arith.constant 8 : i32
    %c0_i32_83 = arith.constant 0 : i32
    %113 = tpu.memref_slice %arg7[%c8_i32_82, %c0_i32_83] : memref<16x32xf32, #tpu.memory_space<vmem>> -> memref<1x32xf32, #tpu.memory_space<vmem>>
    %114 = tpu.memref_slice %arg8[%c0_i32_80] : memref<1x!tpu.dma_semaphore, #tpu.memory_space<semaphore_mem>> -> memref<1x!tpu.dma_semaphore, #tpu.memory_space<semaphore_mem>>
    %115 = tpu.memref_squeeze %114 : memref<1x!tpu.dma_semaphore, #tpu.memory_space<semaphore_mem>> -> memref<!tpu.dma_semaphore, #tpu.memory_space<semaphore_mem>>
    tpu.wait_dma2 semaphore(%115 : memref<!tpu.dma_semaphore, #tpu.memory_space<semaphore_mem>>) src(%112 : memref<1x32xf32, #tpu.memory_space<any>>) dst(%113 : memref<1x32xf32, #tpu.memory_space<vmem>>)
    %c0_i32_84 = arith.constant 0 : i32
    %c0_i32_85 = arith.constant 0 : i32
    %116 = tpu.memref_slice %arg2[%9, %c0_i32_85] : memref<64x32xf32, #tpu.memory_space<any>> -> memref<1x32xf32, #tpu.memory_space<any>>
    %c9_i32_86 = arith.constant 9 : i32
    %c0_i32_87 = arith.constant 0 : i32
    %117 = tpu.memref_slice %arg7[%c9_i32_86, %c0_i32_87] : memref<16x32xf32, #tpu.memory_space<vmem>> -> memref<1x32xf32, #tpu.memory_space<vmem>>
    %118 = tpu.memref_slice %arg8[%c0_i32_84] : memref<1x!tpu.dma_semaphore, #tpu.memory_space<semaphore_mem>> -> memref<1x!tpu.dma_semaphore, #tpu.memory_space<semaphore_mem>>
    %119 = tpu.memref_squeeze %118 : memref<1x!tpu.dma_semaphore, #tpu.memory_space<semaphore_mem>> -> memref<!tpu.dma_semaphore, #tpu.memory_space<semaphore_mem>>
    tpu.wait_dma2 semaphore(%119 : memref<!tpu.dma_semaphore, #tpu.memory_space<semaphore_mem>>) src(%116 : memref<1x32xf32, #tpu.memory_space<any>>) dst(%117 : memref<1x32xf32, #tpu.memory_space<vmem>>)
    %c0_i32_88 = arith.constant 0 : i32
    %c0_i32_89 = arith.constant 0 : i32
    %120 = tpu.memref_slice %arg2[%10, %c0_i32_89] : memref<64x32xf32, #tpu.memory_space<any>> -> memref<1x32xf32, #tpu.memory_space<any>>
    %c10_i32_90 = arith.constant 10 : i32
    %c0_i32_91 = arith.constant 0 : i32
    %121 = tpu.memref_slice %arg7[%c10_i32_90, %c0_i32_91] : memref<16x32xf32, #tpu.memory_space<vmem>> -> memref<1x32xf32, #tpu.memory_space<vmem>>
    %122 = tpu.memref_slice %arg8[%c0_i32_88] : memref<1x!tpu.dma_semaphore, #tpu.memory_space<semaphore_mem>> -> memref<1x!tpu.dma_semaphore, #tpu.memory_space<semaphore_mem>>
    %123 = tpu.memref_squeeze %122 : memref<1x!tpu.dma_semaphore, #tpu.memory_space<semaphore_mem>> -> memref<!tpu.dma_semaphore, #tpu.memory_space<semaphore_mem>>
    tpu.wait_dma2 semaphore(%123 : memref<!tpu.dma_semaphore, #tpu.memory_space<semaphore_mem>>) src(%120 : memref<1x32xf32, #tpu.memory_space<any>>) dst(%121 : memref<1x32xf32, #tpu.memory_space<vmem>>)
    %c0_i32_92 = arith.constant 0 : i32
    %c0_i32_93 = arith.constant 0 : i32
    %124 = tpu.memref_slice %arg2[%11, %c0_i32_93] : memref<64x32xf32, #tpu.memory_space<any>> -> memref<1x32xf32, #tpu.memory_space<any>>
    %c11_i32_94 = arith.constant 11 : i32
    %c0_i32_95 = arith.constant 0 : i32
    %125 = tpu.memref_slice %arg7[%c11_i32_94, %c0_i32_95] : memref<16x32xf32, #tpu.memory_space<vmem>> -> memref<1x32xf32, #tpu.memory_space<vmem>>
    %126 = tpu.memref_slice %arg8[%c0_i32_92] : memref<1x!tpu.dma_semaphore, #tpu.memory_space<semaphore_mem>> -> memref<1x!tpu.dma_semaphore, #tpu.memory_space<semaphore_mem>>
    %127 = tpu.memref_squeeze %126 : memref<1x!tpu.dma_semaphore, #tpu.memory_space<semaphore_mem>> -> memref<!tpu.dma_semaphore, #tpu.memory_space<semaphore_mem>>
    tpu.wait_dma2 semaphore(%127 : memref<!tpu.dma_semaphore, #tpu.memory_space<semaphore_mem>>) src(%124 : memref<1x32xf32, #tpu.memory_space<any>>) dst(%125 : memref<1x32xf32, #tpu.memory_space<vmem>>)
    %c0_i32_96 = arith.constant 0 : i32
    %c0_i32_97 = arith.constant 0 : i32
    %128 = tpu.memref_slice %arg2[%12, %c0_i32_97] : memref<64x32xf32, #tpu.memory_space<any>> -> memref<1x32xf32, #tpu.memory_space<any>>
    %c12_i32_98 = arith.constant 12 : i32
    %c0_i32_99 = arith.constant 0 : i32
    %129 = tpu.memref_slice %arg7[%c12_i32_98, %c0_i32_99] : memref<16x32xf32, #tpu.memory_space<vmem>> -> memref<1x32xf32, #tpu.memory_space<vmem>>
    %130 = tpu.memref_slice %arg8[%c0_i32_96] : memref<1x!tpu.dma_semaphore, #tpu.memory_space<semaphore_mem>> -> memref<1x!tpu.dma_semaphore, #tpu.memory_space<semaphore_mem>>
    %131 = tpu.memref_squeeze %130 : memref<1x!tpu.dma_semaphore, #tpu.memory_space<semaphore_mem>> -> memref<!tpu.dma_semaphore, #tpu.memory_space<semaphore_mem>>
    tpu.wait_dma2 semaphore(%131 : memref<!tpu.dma_semaphore, #tpu.memory_space<semaphore_mem>>) src(%128 : memref<1x32xf32, #tpu.memory_space<any>>) dst(%129 : memref<1x32xf32, #tpu.memory_space<vmem>>)
    %c0_i32_100 = arith.constant 0 : i32
    %c0_i32_101 = arith.constant 0 : i32
    %132 = tpu.memref_slice %arg2[%13, %c0_i32_101] : memref<64x32xf32, #tpu.memory_space<any>> -> memref<1x32xf32, #tpu.memory_space<any>>
    %c13_i32_102 = arith.constant 13 : i32
    %c0_i32_103 = arith.constant 0 : i32
    %133 = tpu.memref_slice %arg7[%c13_i32_102, %c0_i32_103] : memref<16x32xf32, #tpu.memory_space<vmem>> -> memref<1x32xf32, #tpu.memory_space<vmem>>
    %134 = tpu.memref_slice %arg8[%c0_i32_100] : memref<1x!tpu.dma_semaphore, #tpu.memory_space<semaphore_mem>> -> memref<1x!tpu.dma_semaphore, #tpu.memory_space<semaphore_mem>>
    %135 = tpu.memref_squeeze %134 : memref<1x!tpu.dma_semaphore, #tpu.memory_space<semaphore_mem>> -> memref<!tpu.dma_semaphore, #tpu.memory_space<semaphore_mem>>
    tpu.wait_dma2 semaphore(%135 : memref<!tpu.dma_semaphore, #tpu.memory_space<semaphore_mem>>) src(%132 : memref<1x32xf32, #tpu.memory_space<any>>) dst(%133 : memref<1x32xf32, #tpu.memory_space<vmem>>)
    %c0_i32_104 = arith.constant 0 : i32
    %c0_i32_105 = arith.constant 0 : i32
    %136 = tpu.memref_slice %arg2[%14, %c0_i32_105] : memref<64x32xf32, #tpu.memory_space<any>> -> memref<1x32xf32, #tpu.memory_space<any>>
    %c14_i32_106 = arith.constant 14 : i32
    %c0_i32_107 = arith.constant 0 : i32
    %137 = tpu.memref_slice %arg7[%c14_i32_106, %c0_i32_107] : memref<16x32xf32, #tpu.memory_space<vmem>> -> memref<1x32xf32, #tpu.memory_space<vmem>>
    %138 = tpu.memref_slice %arg8[%c0_i32_104] : memref<1x!tpu.dma_semaphore, #tpu.memory_space<semaphore_mem>> -> memref<1x!tpu.dma_semaphore, #tpu.memory_space<semaphore_mem>>
    %139 = tpu.memref_squeeze %138 : memref<1x!tpu.dma_semaphore, #tpu.memory_space<semaphore_mem>> -> memref<!tpu.dma_semaphore, #tpu.memory_space<semaphore_mem>>
    tpu.wait_dma2 semaphore(%139 : memref<!tpu.dma_semaphore, #tpu.memory_space<semaphore_mem>>) src(%136 : memref<1x32xf32, #tpu.memory_space<any>>) dst(%137 : memref<1x32xf32, #tpu.memory_space<vmem>>)
    %c0_i32_108 = arith.constant 0 : i32
    %c0_i32_109 = arith.constant 0 : i32
    %140 = tpu.memref_slice %arg2[%15, %c0_i32_109] : memref<64x32xf32, #tpu.memory_space<any>> -> memref<1x32xf32, #tpu.memory_space<any>>
    %c15_i32_110 = arith.constant 15 : i32
    %c0_i32_111 = arith.constant 0 : i32
    %141 = tpu.memref_slice %arg7[%c15_i32_110, %c0_i32_111] : memref<16x32xf32, #tpu.memory_space<vmem>> -> memref<1x32xf32, #tpu.memory_space<vmem>>
    %142 = tpu.memref_slice %arg8[%c0_i32_108] : memref<1x!tpu.dma_semaphore, #tpu.memory_space<semaphore_mem>> -> memref<1x!tpu.dma_semaphore, #tpu.memory_space<semaphore_mem>>
    %143 = tpu.memref_squeeze %142 : memref<1x!tpu.dma_semaphore, #tpu.memory_space<semaphore_mem>> -> memref<!tpu.dma_semaphore, #tpu.memory_space<semaphore_mem>>
    tpu.wait_dma2 semaphore(%143 : memref<!tpu.dma_semaphore, #tpu.memory_space<semaphore_mem>>) src(%140 : memref<1x32xf32, #tpu.memory_space<any>>) dst(%141 : memref<1x32xf32, #tpu.memory_space<vmem>>)
    %c0_112 = arith.constant 0 : index
    %c0_113 = arith.constant 0 : index
    %144 = vector.load %arg3[%c0_112, %c0_113] : memref<16x16xf32, #tpu.memory_space<vmem>>, vector<16x16xf32>
    %c0_114 = arith.constant 0 : index
    %c0_115 = arith.constant 0 : index
    %145 = vector.load %arg7[%c0_114, %c0_115] : memref<16x32xf32, #tpu.memory_space<vmem>>, vector<16x32xf32>
    %146 = arith.truncf %145 : vector<16x32xf32> to vector<16x32xbf16>
    %c0_116 = arith.constant 0 : index
    %c0_117 = arith.constant 0 : index
    %c0_118 = arith.constant 0 : index
    %147 = vector.load %arg4[%c0_116, %c0_117, %c0_118] : memref<2x128x128xbf16, #tpu.memory_space<vmem>>, vector<1x128x128xbf16>
    %148 = vector.shape_cast %147 : vector<1x128x128xbf16> to vector<128x128xbf16>
    %149 = vector.extract_strided_slice %148 {offsets = [0, 0], sizes = [32, 128], strides = [1, 1]} : vector<128x128xbf16> to vector<32x128xbf16>
    %cst = arith.constant dense<0.000000e+00> : vector<16x128xf32>
    %150 = tpu.matmul %146, %149, %cst {dimension_numbers = #tpu.dot_dimension_numbers<[1], [0], [0], [1], [0, 0, 1, 1], [], []>} : vector<16x32xbf16>, vector<32x128xbf16>, vector<16x128xf32> -> vector<16x128xf32>
    %cst_119 = arith.constant dense<0.000000e+00> : vector<16x128xf32>
    %151 = tpu.matmul %144, %150, %cst_119 {dimension_numbers = #tpu.dot_dimension_numbers<[1], [0], [0], [1], [0, 0, 1, 1], [], []>} : vector<16x16xf32>, vector<16x128xf32>, vector<16x128xf32> -> vector<16x128xf32>
    %c0_120 = arith.constant 0 : index
    %c0_121 = arith.constant 0 : index
    %c0_122 = arith.constant 0 : index
    %152 = vector.load %arg5[%c0_120, %c0_121, %c0_122] : memref<2x1x128xf32, #tpu.memory_space<vmem>>, vector<1x1x128xf32>
    %153 = vector.shape_cast %152 : vector<1x1x128xf32> to vector<1x128xf32>
    %154 = vector.broadcast %153 : vector<1x128xf32> to vector<16x128xf32>
    %155 = arith.addf %151, %154 : vector<16x128xf32>
    %cst_123 = arith.constant 0.000000e+00 : f32
    %156 = vector.broadcast %cst_123 : f32 to vector<16x128xf32>
    %157 = arith.maximumf %155, %156 : vector<16x128xf32>
    %158 = arith.truncf %157 : vector<16x128xf32> to vector<16x128xbf16>
    %c1_124 = arith.constant 1 : index
    %c0_125 = arith.constant 0 : index
    %c0_126 = arith.constant 0 : index
    %159 = vector.load %arg4[%c1_124, %c0_125, %c0_126] : memref<2x128x128xbf16, #tpu.memory_space<vmem>>, vector<1x128x128xbf16>
    %160 = vector.shape_cast %159 : vector<1x128x128xbf16> to vector<128x128xbf16>
    %cst_127 = arith.constant dense<0.000000e+00> : vector<16x128xf32>
    %161 = tpu.matmul %158, %160, %cst_127 {dimension_numbers = #tpu.dot_dimension_numbers<[1], [0], [0], [1], [0, 0, 1, 1], [], []>} : vector<16x128xbf16>, vector<128x128xbf16>, vector<16x128xf32> -> vector<16x128xf32>
    %cst_128 = arith.constant dense<0.000000e+00> : vector<16x128xf32>
    %162 = tpu.matmul %144, %161, %cst_128 {dimension_numbers = #tpu.dot_dimension_numbers<[1], [0], [0], [1], [0, 0, 1, 1], [], []>} : vector<16x16xf32>, vector<16x128xf32>, vector<16x128xf32> -> vector<16x128xf32>
    %c1_129 = arith.constant 1 : index
    %c0_130 = arith.constant 0 : index
    %c0_131 = arith.constant 0 : index
    %163 = vector.load %arg5[%c1_129, %c0_130, %c0_131] : memref<2x1x128xf32, #tpu.memory_space<vmem>>, vector<1x1x128xf32>
    %164 = vector.shape_cast %163 : vector<1x1x128xf32> to vector<1x128xf32>
    %165 = vector.broadcast %164 : vector<1x128xf32> to vector<16x128xf32>
    %166 = arith.addf %162, %165 : vector<16x128xf32>
    %c0_132 = arith.constant 0 : index
    %c0_133 = arith.constant 0 : index
    %167 = vector.load %arg6[%c0_132, %c0_133] : memref<16x128xf32, #tpu.memory_space<vmem>>, vector<16x128xf32>
    tpu.vector_store %arg6[%c0_132, %c0_133], %166 {strides = array<i32>} : memref<16x128xf32, #tpu.memory_space<vmem>>, vector<16x128xf32>,
    return
  }
  func.func @transform_1(%arg0: i32, %arg1: memref<16xi32, #tpu.memory_space<smem>>) -> (i32, i32) {
    %c0_i32 = arith.constant 0 : i32
    %c0_i32_0 = arith.constant 0 : i32
    %c0_i32_1 = arith.constant 0 : i32
    return %c0_i32, %c0_i32_0 : i32, i32
  }
  func.func @transform_2(%arg0: i32, %arg1: memref<16xi32, #tpu.memory_space<smem>>) -> (i32, i32, i32) {
    %c0_i32 = arith.constant 0 : i32
    %c0_i32_0 = arith.constant 0 : i32
    %c0_i32_1 = arith.constant 0 : i32
    %c0_i32_2 = arith.constant 0 : i32
    return %c0_i32, %c0_i32_0, %c0_i32_1 : i32, i32, i32
  }
  func.func @transform_3(%arg0: i32, %arg1: memref<16xi32, #tpu.memory_space<smem>>) -> (i32, i32, i32) {
    %c0_i32 = arith.constant 0 : i32
    %c0_i32_0 = arith.constant 0 : i32
    %c0_i32_1 = arith.constant 0 : i32
    %c0_i32_2 = arith.constant 0 : i32
    return %c0_i32, %c0_i32_0, %c0_i32_1 : i32, i32, i32
  }
  func.func @transform_4(%arg0: i32, %arg1: memref<16xi32, #tpu.memory_space<smem>>) -> (i32, i32) {
    %c0_i32 = arith.constant 0 : i32
    %c0_i32_0 = arith.constant 0 : i32
    %c0_i32_1 = arith.constant 0 : i32
    return %c0_i32, %c0_i32_0 : i32, i32
  }
}

</mosaic_0001>

<llo_original>
// kernel: tpu_custom_call.1
$region0: #{tpu_custom_call.1}
  #allocation0 [shape = 'u32[]', space=smem, size = 0x4, offset = 0x4, fixed_abs, tag = 'smem constant byte address 0x4 - core index']
  #allocation1 [shape = 'u32[144,128]{1,0:T(1,128)}', space=vmem, size = 0x12000, scoped, tag = 'internal scratch']
  #allocation2 [shape = 'f32[16,32]{1,0:T(8,128)}', space=vmem, size = 0x2000, scoped, tag = 'scratch operand']
  #allocation3 [shape = 's32[1]{0}', space=sflag, size = 0x4, scoped, tag = 'scratch operand']
  #allocation4 [shape = 's32[1]{0}', space=sflag, size = 0x4, scoped, tag = 'scoped memory for tpu_custom_call.1']
  #allocation5 [shape = 'u8[512]{0}', space=smem, size = 0x200, scoped, tag = 'prefetched SMEM operand 0']
  #allocation10 [shape = 's32[]', space=sflag, size = 0x4, offset = 0, fixed_abs, tag = 'sflag constant byte address 0x0 - dummy sync flag']
  #allocation11 [shape = 's32[]', space=sflag, size = 0x4, offset = 0, fixed_abs, tag = 'sflag constant byte address 0x0 - dummy sync flag']
  #allocation12 [shape = 's32[]', space=sflag, size = 0x4, offset = 0, fixed_abs, tag = 'sflag constant byte address 0x0 - dummy sync flag']
  #allocation13 [shape = 's32[]', space=sflag, size = 0x4, offset = 0, fixed_abs, tag = 'sflag constant byte address 0x0 - dummy sync flag']
  #allocation14 [shape = 's32[]', space=sflag, size = 0x4, offset = 0, fixed_abs, tag = 'sflag constant byte address 0x0 - dummy sync flag']
  #allocation15 [shape = 's32[]', space=sflag, size = 0x4, offset = 0, fixed_abs, tag = 'sflag constant byte address 0x0 - dummy sync flag']
  #allocation16 [shape = 's32[]', space=sflag, size = 0x4, offset = 0, fixed_abs, tag = 'sflag constant byte address 0x0 - dummy sync flag']
  #allocation17 [shape = 's32[]', space=sflag, size = 0x4, offset = 0, fixed_abs, tag = 'sflag constant byte address 0x0 - dummy sync flag']
  #allocation18 [shape = 's32[]', space=sflag, size = 0x4, offset = 0, fixed_abs, tag = 'sflag constant byte address 0x0 - dummy sync flag']
  #allocation19 [shape = 's32[]', space=sflag, size = 0x4, offset = 0, fixed_abs, tag = 'sflag constant byte address 0x0 - dummy sync flag']
  #allocation20 [shape = 's32[]', space=sflag, size = 0x4, offset = 0, fixed_abs, tag = 'sflag constant byte address 0x0 - dummy sync flag']
  #allocation21 [shape = 's32[]', space=sflag, size = 0x4, offset = 0, fixed_abs, tag = 'sflag constant byte address 0x0 - dummy sync flag']
  #allocation22 [shape = 's32[]', space=sflag, size = 0x4, offset = 0, fixed_abs, tag = 'sflag constant byte address 0x0 - dummy sync flag']
  #allocation23 [shape = 's32[]', space=sflag, size = 0x4, offset = 0, fixed_abs, tag = 'sflag constant byte address 0x0 - dummy sync flag']
  #allocation24 [shape = 's32[]', space=sflag, size = 0x4, offset = 0, fixed_abs, tag = 'sflag constant byte address 0x0 - dummy sync flag']
  #allocation25 [shape = 's32[]', space=sflag, size = 0x4, offset = 0, fixed_abs, tag = 'sflag constant byte address 0x0 - dummy sync flag']
  %s0 = inlined_call_operand.vmem [shape: s32[16], index: 0, kind: input, shape index: {}]
  %s1 = inlined_call_operand.vmem [shape: f32[64,32], index: 1, kind: input, shape index: {}]
  %s2 = inlined_call_operand.vmem [shape: f32[16,16], index: 2, kind: input, shape index: {}]
  %s3 = inlined_call_operand.hbm [shape: bf16[2,128,128], index: 3, kind: input, shape index: {}]
  %s4 = inlined_call_operand.vmem [shape: f32[2,1,128], index: 4, kind: input, shape index: {}]
  %s5 = inlined_call_operand.hbm [shape: f32[16,128], index: 5, kind: output, shape index: {}]
  %s6 = sld [smem:[#allocation0]]
  $region506: #{tpu_custom_call.1} parent=0
    _
  %s8 = ssub.s32 1, %s6
  %s9 = scalar_select 0, %s8, %s6
  %s10 = sshll.u32 %s0, 4
  %s11 = int_to_ptr.vmem [resolvable:$true] %s10
  %13 = dma.vmem_to_smem %s11, 16, [#allocation5], [#allocation4]
  %14 = dma.done [#allocation4], 16
  %15 = sfence
  $region1: #{tpu_custom_call.1} parent=0
    #allocation6 [shape = 'u8[65536]{0}', space=vmem, size = 0x10000, scoped, tag = 'input window, operand 3, single buffered']
    #allocation7 [shape = 's32[1]{0}', space=sflag, size = 0x4, scoped, tag = 'scoped memory for tpu_custom_call.1']
    #allocation8 [shape = 's32[1]{0}', space=sflag, size = 0x4, scoped, tag = 'scoped memory for tpu_custom_call.1']
    #allocation9 [shape = 'u8[8192]{0}', space=vmem, size = 0x2000, scoped, tag = 'output window, operand 0, single buffered']
    %16 = vsyncpa [#allocation7], 0
    %17 = vsyncpa [#allocation8], 0
    // Predicated region
    $region2: #{tpu_custom_call.1} parent=1 // pred_check
      _
    $region3: #{tpu_custom_call.1} parent=1 // pred_check_branch
      %19 = sbr.rel (0) target = $region5
    $region4: #{tpu_custom_call.1} parent=1 // pred_region
      _
    $region5: #{tpu_custom_call.1} parent=1 // pred_fallthru
      _
    // Predicated region
    $region6: #{tpu_custom_call.1} parent=1 // pred_check
      _
    $region7: #{tpu_custom_call.1} parent=1 // pred_check_branch
      %21 = sbr.rel (0) target = $region9
    $region8: #{tpu_custom_call.1} parent=1 // pred_region
      %s23 = ssub.s32 2048, 2048
      %24 = vsyncadd [#allocation7], %s23
      %s25 = sshll.u32 [#allocation6], 4
      %s26 = int_to_ptr.vmem [resolvable:$true] %s25
      %31 = dma.hbm_to_vmem [thread:$0]  %s3, 2048, %s26, [#allocation7], 64, 64, 4
    $region9: #{tpu_custom_call.1} parent=1 // pred_fallthru
      _
    // Predicated region
    $region10: #{tpu_custom_call.1} parent=1 // pred_check
      _
    $region11: #{tpu_custom_call.1} parent=1 // pred_check_branch
      %33 = sbr.rel (0) target = $region13
    $region12: #{tpu_custom_call.1} parent=1 // pred_region
      _
    $region13: #{tpu_custom_call.1} parent=1 // pred_fallthru
      _
    // Predicated region
    $region14: #{tpu_custom_call.1} parent=1 // pred_check
      _
    $region15: #{tpu_custom_call.1} parent=1 // pred_check_branch
      %35 = sbr.rel (0) target = $region17
    $region16: #{tpu_custom_call.1} parent=1 // pred_region
      %36 = dma.done [#allocation7], 2048
    $region17: #{tpu_custom_call.1} parent=1 // pred_fallthru
      _
    %s38 = sld [smem:[#allocation5]]
    %s39 = sld [smem:[#allocation5 + $0x1]]
    %s40 = sld [smem:[#allocation5 + $0x2]]
    %s41 = sld [smem:[#allocation5 + $0x3]]
    %s42 = sld [smem:[#allocation5 + $0x4]]
    %s43 = sld [smem:[#allocation5 + $0x5]]
    %s44 = sld [smem:[#allocation5 + $0x6]]
    %s45 = sld [smem:[#allocation5 + $0x7]]
    %s46 = sld [smem:[#allocation5 + $0x8]]
    %s47 = sld [smem:[#allocation5 + $0x9]]
    %s48 = sld [smem:[#allocation5 + $0xa]]
    %s49 = sld [smem:[#allocation5 + $0xb]]
    %s50 = sld [smem:[#allocation5 + $0xc]]
    %s51 = sld [smem:[#allocation5 + $0xd]]
    %s52 = sld [smem:[#allocation5 + $0xe]]
    %s53 = sld [smem:[#allocation5 + $0xf]]
    %s54 = scalar_lea.vmem %s1, %s38
    %p56 = scmp.lt.u32.totalorder 1, 8
    %p57 = pneg %p56
    // Predicated region
    $region18: #{tpu_custom_call.1} parent=1 // pred_check
      _
    $region19: #{tpu_custom_call.1} parent=1 // pred_check_branch
      %59 = sbr.rel (%p56) target = $region21
    $region20: #{tpu_custom_call.1} parent=1 // pred_region
      %s74 = sand.u32 1, 7
      %p75 = scmp.eq.s32.totalorder %s74, 0
      %p76 = pneg %p75
      // Predicated region
      $region33: #{tpu_custom_call.1} parent=20 // pred_check
        _
      $region34: #{tpu_custom_call.1} parent=20 // pred_check_branch
        %78 = sbr.rel (%p75) target = $region36
      $region35: #{tpu_custom_call.1} parent=20 // pred_region
        %s79 = sand.u32 1, 7
        %s80 = ssub.s32 1, %s79
        %s81 = scalar_lea.vmem %s54, %s80
        %s82 = ssub.s32 1, %s79
        %s83 = scalar_lea.vmem [#allocation2], %s82
        %s84 = sshllo.u32 0, %s79
        loop: start=0, step=1, limit=1
        $region37: #{tpu_custom_call.1} parent=35 // loop_pre_header
          _
        $region38: #{tpu_custom_call.1} parent=35 // loop_header
          %s86 = sphi 0, %s90
          %p87 = scmp.ge.s32.totalorder %s86, 1
          %s91 = sphi %s81, %s81
          %s92 = sphi %s83, %s83
        $region39: #{tpu_custom_call.1} parent=35 // loop_header_branch
          %89 = sbr.rel (%p87) target = $region43
        $region40: #{tpu_custom_call.1} parent=35 // loop_body
          %v93 = vld [vmem:[%s91] sm:%s84]
          %94 = vst [vmem:[%s92] sm:%s84] %v93
        $region41: #{tpu_custom_call.1} parent=35 // loop_footer
          %s90 = sadd.s32 1, %s86
        $region42: #{tpu_custom_call.1} parent=35 // loop_footer_branch
          %85 = sbr.rel target = $region38
        $region43: #{tpu_custom_call.1} parent=35 // loop_exit
          _
      $region36: #{tpu_custom_call.1} parent=20 // pred_fallthru
        _
    $region21: #{tpu_custom_call.1} parent=1 // pred_fallthru
      _
    // Predicated region
    $region22: #{tpu_custom_call.1} parent=1 // pred_check
      %p60 = pneg %p56
    $region23: #{tpu_custom_call.1} parent=1 // pred_check_branch
      %62 = sbr.rel (%p60) target = $region25
    $region24: #{tpu_custom_call.1} parent=1 // pred_region
      %s63 = sshllo.u32 0, 1
      loop: start=0, step=1, limit=1
      $region26: #{tpu_custom_call.1} parent=24 // loop_pre_header
        _
      $region27: #{tpu_custom_call.1} parent=24 // loop_header
        %s65 = sphi 0, %s69
        %p66 = scmp.ge.s32.totalorder %s65, 1
        %s70 = sphi %s54, %s54
        %s71 = sphi [#allocation2], [#allocation2]
      $region28: #{tpu_custom_call.1} parent=24 // loop_header_branch
        %68 = sbr.rel (%p66) target = $region32
      $region29: #{tpu_custom_call.1} parent=24 // loop_body
        %v72 = vld [vmem:[%s70] sm:%s63]
        %73 = vst [vmem:[%s71] sm:%s63] %v72
      $region30: #{tpu_custom_call.1} parent=24 // loop_footer
        %s69 = sadd.s32 1, %s65
      $region31: #{tpu_custom_call.1} parent=24 // loop_footer_branch
        %64 = sbr.rel target = $region27
      $region32: #{tpu_custom_call.1} parent=24 // loop_exit
        _
    $region25: #{tpu_custom_call.1} parent=1 // pred_fallthru
      _
    // Predicated region
    $region44: #{tpu_custom_call.1} parent=1 // pred_check
      _
    $region45: #{tpu_custom_call.1} parent=1 // pred_check_branch
      %97 = sbr.rel (0) target = $region47
    $region46: #{tpu_custom_call.1} parent=1 // pred_region
      %98 = vsyncadd [#allocation3], 16
    $region47: #{tpu_custom_call.1} parent=1 // pred_fallthru
      _
    %s99 = scalar_lea.vmem %s1, %s39
    %s100 = scalar_lea.vmem [#allocation2], 1
    %p102 = scmp.lt.u32.totalorder 1, 8
    %p103 = pneg %p102
    // Predicated region
    $region48: #{tpu_custom_call.1} parent=1 // pred_check
      _
    $region49: #{tpu_custom_call.1} parent=1 // pred_check_branch
      %105 = sbr.rel (%p102) target = $region51
    $region50: #{tpu_custom_call.1} parent=1 // pred_region
      %s120 = sand.u32 1, 7
      %p121 = scmp.eq.s32.totalorder %s120, 0
      %p122 = pneg %p121
      // Predicated region
      $region63: #{tpu_custom_call.1} parent=50 // pred_check
        _
      $region64: #{tpu_custom_call.1} parent=50 // pred_check_branch
        %124 = sbr.rel (%p121) target = $region66
      $region65: #{tpu_custom_call.1} parent=50 // pred_region
        %s125 = sand.u32 1, 7
        %s126 = ssub.s32 1, %s125
        %s127 = scalar_lea.vmem %s99, %s126
        %s128 = ssub.s32 1, %s125
        %s129 = scalar_lea.vmem %s100, %s128 [#allocation2]
        %s130 = sshllo.u32 0, %s125
        loop: start=0, step=1, limit=1
        $region67: #{tpu_custom_call.1} parent=65 // loop_pre_header
          _
        $region68: #{tpu_custom_call.1} parent=65 // loop_header
          %s132 = sphi 0, %s136
          %p133 = scmp.ge.s32.totalorder %s132, 1
          %s137 = sphi %s127, %s127
          %s138 = sphi %s129, %s129
        $region69: #{tpu_custom_call.1} parent=65 // loop_header_branch
          %135 = sbr.rel (%p133) target = $region73
        $region70: #{tpu_custom_call.1} parent=65 // loop_body
          %v139 = vld [vmem:[%s137] sm:%s130]
          %140 = vst [vmem:[%s138] sm:%s130] %v139
        $region71: #{tpu_custom_call.1} parent=65 // loop_footer
          %s136 = sadd.s32 1, %s132
        $region72: #{tpu_custom_call.1} parent=65 // loop_footer_branch
          %131 = sbr.rel target = $region68
        $region73: #{tpu_custom_call.1} parent=65 // loop_exit
          _
      $region66: #{tpu_custom_call.1} parent=50 // pred_fallthru
        _
    $region51: #{tpu_custom_call.1} parent=1 // pred_fallthru
      _
    // Predicated region
    $region52: #{tpu_custom_call.1} parent=1 // pred_check
      %p106 = pneg %p102
    $region53: #{tpu_custom_call.1} parent=1 // pred_check_branch
      %108 = sbr.rel (%p106) target = $region55
    $region54: #{tpu_custom_call.1} parent=1 // pred_region
      %s109 = sshllo.u32 0, 1
      loop: start=0, step=1, limit=1
      $region56: #{tpu_custom_call.1} parent=54 // loop_pre_header
        _
      $region57: #{tpu_custom_call.1} parent=54 // loop_header
        %s111 = sphi 0, %s115
        %p112 = scmp.ge.s32.totalorder %s111, 1
        %s116 = sphi %s99, %s99
        %s117 = sphi %s100, %s100
      $region58: #{tpu_custom_call.1} parent=54 // loop_header_branch
        %114 = sbr.rel (%p112) target = $region62
      $region59: #{tpu_custom_call.1} parent=54 // loop_body
        %v118 = vld [vmem:[%s116] sm:%s109]
        %119 = vst [vmem:[%s117] sm:%s109] %v118
      $region60: #{tpu_custom_call.1} parent=54 // loop_footer
        %s115 = sadd.s32 1, %s111
      $region61: #{tpu_custom_call.1} parent=54 // loop_footer_branch
        %110 = sbr.rel target = $region57
      $region62: #{tpu_custom_call.1} parent=54 // loop_exit
        _
    $region55: #{tpu_custom_call.1} parent=1 // pred_fallthru
      _
    // Predicated region
    $region74: #{tpu_custom_call.1} parent=1 // pred_check
      _
    $region75: #{tpu_custom_call.1} parent=1 // pred_check_branch
      %143 = sbr.rel (0) target = $region77
    $region76: #{tpu_custom_call.1} parent=1 // pred_region
      %144 = vsyncadd [#allocation3], 16
    $region77: #{tpu_custom_call.1} parent=1 // pred_fallthru
      _
    %s145 = scalar_lea.vmem %s1, %s40
    %s146 = scalar_lea.vmem [#allocation2], 2
    %p148 = scmp.lt.u32.totalorder 1, 8
    %p149 = pneg %p148
    // Predicated region
    $region78: #{tpu_custom_call.1} parent=1 // pred_check
      _
    $region79: #{tpu_custom_call.1} parent=1 // pred_check_branch
      %151 = sbr.rel (%p148) target = $region81
    $region80: #{tpu_custom_call.1} parent=1 // pred_region
      %s166 = sand.u32 1, 7
      %p167 = scmp.eq.s32.totalorder %s166, 0
      %p168 = pneg %p167
      // Predicated region
      $region93: #{tpu_custom_call.1} parent=80 // pred_check
        _
      $region94: #{tpu_custom_call.1} parent=80 // pred_check_branch
        %170 = sbr.rel (%p167) target = $region96
      $region95: #{tpu_custom_call.1} parent=80 // pred_region
        %s171 = sand.u32 1, 7
        %s172 = ssub.s32 1, %s171
        %s173 = scalar_lea.vmem %s145, %s172
        %s174 = ssub.s32 1, %s171
        %s175 = scalar_lea.vmem %s146, %s174 [#allocation2]
        %s176 = sshllo.u32 0, %s171
        loop: start=0, step=1, limit=1
        $region97: #{tpu_custom_call.1} parent=95 // loop_pre_header
          _
        $region98: #{tpu_custom_call.1} parent=95 // loop_header
          %s178 = sphi 0, %s182
          %p179 = scmp.ge.s32.totalorder %s178, 1
          %s183 = sphi %s173, %s173
          %s184 = sphi %s175, %s175
        $region99: #{tpu_custom_call.1} parent=95 // loop_header_branch
          %181 = sbr.rel (%p179) target = $region103
        $region100: #{tpu_custom_call.1} parent=95 // loop_body
          %v185 = vld [vmem:[%s183] sm:%s176]
          %186 = vst [vmem:[%s184] sm:%s176] %v185
        $region101: #{tpu_custom_call.1} parent=95 // loop_footer
          %s182 = sadd.s32 1, %s178
        $region102: #{tpu_custom_call.1} parent=95 // loop_footer_branch
          %177 = sbr.rel target = $region98
        $region103: #{tpu_custom_call.1} parent=95 // loop_exit
          _
      $region96: #{tpu_custom_call.1} parent=80 // pred_fallthru
        _
    $region81: #{tpu_custom_call.1} parent=1 // pred_fallthru
      _
    // Predicated region
    $region82: #{tpu_custom_call.1} parent=1 // pred_check
      %p152 = pneg %p148
    $region83: #{tpu_custom_call.1} parent=1 // pred_check_branch
      %154 = sbr.rel (%p152) target = $region85
    $region84: #{tpu_custom_call.1} parent=1 // pred_region
      %s155 = sshllo.u32 0, 1
      loop: start=0, step=1, limit=1
      $region86: #{tpu_custom_call.1} parent=84 // loop_pre_header
        _
      $region87: #{tpu_custom_call.1} parent=84 // loop_header
        %s157 = sphi 0, %s161
        %p158 = scmp.ge.s32.totalorder %s157, 1
        %s162 = sphi %s145, %s145
        %s163 = sphi %s146, %s146
      $region88: #{tpu_custom_call.1} parent=84 // loop_header_branch
        %160 = sbr.rel (%p158) target = $region92
      $region89: #{tpu_custom_call.1} parent=84 // loop_body
        %v164 = vld [vmem:[%s162] sm:%s155]
        %165 = vst [vmem:[%s163] sm:%s155] %v164
      $region90: #{tpu_custom_call.1} parent=84 // loop_footer
        %s161 = sadd.s32 1, %s157
      $region91: #{tpu_custom_call.1} parent=84 // loop_footer_branch
        %156 = sbr.rel target = $region87
      $region92: #{tpu_custom_call.1} parent=84 // loop_exit
        _
    $region85: #{tpu_custom_call.1} parent=1 // pred_fallthru
      _
    // Predicated region
    $region104: #{tpu_custom_call.1} parent=1 // pred_check
      _
    $region105: #{tpu_custom_call.1} parent=1 // pred_check_branch
      %189 = sbr.rel (0) target = $region107
    $region106: #{tpu_custom_call.1} parent=1 // pred_region
      %190 = vsyncadd [#allocation3], 16
    $region107: #{tpu_custom_call.1} parent=1 // pred_fallthru
      _
    %s191 = scalar_lea.vmem %s1, %s41
    %s192 = scalar_lea.vmem [#allocation2], 3
    %p194 = scmp.lt.u32.totalorder 1, 8
    %p195 = pneg %p194
    // Predicated region
    $region108: #{tpu_custom_call.1} parent=1 // pred_check
      _
    $region109: #{tpu_custom_call.1} parent=1 // pred_check_branch
      %197 = sbr.rel (%p194) target = $region111
    $region110: #{tpu_custom_call.1} parent=1 // pred_region
      %s212 = sand.u32 1, 7
      %p213 = scmp.eq.s32.totalorder %s212, 0
      %p214 = pneg %p213
      // Predicated region
      $region123: #{tpu_custom_call.1} parent=110 // pred_check
        _
      $region124: #{tpu_custom_call.1} parent=110 // pred_check_branch
        %216 = sbr.rel (%p213) target = $region126
      $region125: #{tpu_custom_call.1} parent=110 // pred_region
        %s217 = sand.u32 1, 7
        %s218 = ssub.s32 1, %s217
        %s219 = scalar_lea.vmem %s191, %s218
        %s220 = ssub.s32 1, %s217
        %s221 = scalar_lea.vmem %s192, %s220 [#allocation2]
        %s222 = sshllo.u32 0, %s217
        loop: start=0, step=1, limit=1
        $region127: #{tpu_custom_call.1} parent=125 // loop_pre_header
          _
        $region128: #{tpu_custom_call.1} parent=125 // loop_header
          %s224 = sphi 0, %s228
          %p225 = scmp.ge.s32.totalorder %s224, 1
          %s229 = sphi %s219, %s219
          %s230 = sphi %s221, %s221
        $region129: #{tpu_custom_call.1} parent=125 // loop_header_branch
          %227 = sbr.rel (%p225) target = $region133
        $region130: #{tpu_custom_call.1} parent=125 // loop_body
          %v231 = vld [vmem:[%s229] sm:%s222]
          %232 = vst [vmem:[%s230] sm:%s222] %v231
        $region131: #{tpu_custom_call.1} parent=125 // loop_footer
          %s228 = sadd.s32 1, %s224
        $region132: #{tpu_custom_call.1} parent=125 // loop_footer_branch
          %223 = sbr.rel target = $region128
        $region133: #{tpu_custom_call.1} parent=125 // loop_exit
          _
      $region126: #{tpu_custom_call.1} parent=110 // pred_fallthru
        _
    $region111: #{tpu_custom_call.1} parent=1 // pred_fallthru
      _
    // Predicated region
    $region112: #{tpu_custom_call.1} parent=1 // pred_check
      %p198 = pneg %p194
    $region113: #{tpu_custom_call.1} parent=1 // pred_check_branch
      %200 = sbr.rel (%p198) target = $region115
    $region114: #{tpu_custom_call.1} parent=1 // pred_region
      %s201 = sshllo.u32 0, 1
      loop: start=0, step=1, limit=1
      $region116: #{tpu_custom_call.1} parent=114 // loop_pre_header
        _
      $region117: #{tpu_custom_call.1} parent=114 // loop_header
        %s203 = sphi 0, %s207
        %p204 = scmp.ge.s32.totalorder %s203, 1
        %s208 = sphi %s191, %s191
        %s209 = sphi %s192, %s192
      $region118: #{tpu_custom_call.1} parent=114 // loop_header_branch
        %206 = sbr.rel (%p204) target = $region122
      $region119: #{tpu_custom_call.1} parent=114 // loop_body
        %v210 = vld [vmem:[%s208] sm:%s201]
        %211 = vst [vmem:[%s209] sm:%s201] %v210
      $region120: #{tpu_custom_call.1} parent=114 // loop_footer
        %s207 = sadd.s32 1, %s203
      $region121: #{tpu_custom_call.1} parent=114 // loop_footer_branch
        %202 = sbr.rel target = $region117
      $region122: #{tpu_custom_call.1} parent=114 // loop_exit
        _
    $region115: #{tpu_custom_call.1} parent=1 // pred_fallthru
      _
    // Predicated region
    $region134: #{tpu_custom_call.1} parent=1 // pred_check
      _
    $region135: #{tpu_custom_call.1} parent=1 // pred_check_branch
      %235 = sbr.rel (0) target = $region137
    $region136: #{tpu_custom_call.1} parent=1 // pred_region
      %236 = vsyncadd [#allocation3], 16
    $region137: #{tpu_custom_call.1} parent=1 // pred_fallthru
      _
    %s237 = scalar_lea.vmem %s1, %s42
    %s238 = scalar_lea.vmem [#allocation2], 4
    %p240 = scmp.lt.u32.totalorder 1, 8
    %p241 = pneg %p240
    // Predicated region
    $region138: #{tpu_custom_call.1} parent=1 // pred_check
      _
    $region139: #{tpu_custom_call.1} parent=1 // pred_check_branch
      %243 = sbr.rel (%p240) target = $region141
    $region140: #{tpu_custom_call.1} parent=1 // pred_region
      %s258 = sand.u32 1, 7
      %p259 = scmp.eq.s32.totalorder %s258, 0
      %p260 = pneg %p259
      // Predicated region
      $region153: #{tpu_custom_call.1} parent=140 // pred_check
        _
      $region154: #{tpu_custom_call.1} parent=140 // pred_check_branch
        %262 = sbr.rel (%p259) target = $region156
      $region155: #{tpu_custom_call.1} parent=140 // pred_region
        %s263 = sand.u32 1, 7
        %s264 = ssub.s32 1, %s263
        %s265 = scalar_lea.vmem %s237, %s264
        %s266 = ssub.s32 1, %s263
        %s267 = scalar_lea.vmem %s238, %s266 [#allocation2]
        %s268 = sshllo.u32 0, %s263
        loop: start=0, step=1, limit=1
        $region157: #{tpu_custom_call.1} parent=155 // loop_pre_header
          _
        $region158: #{tpu_custom_call.1} parent=155 // loop_header
          %s270 = sphi 0, %s274
          %p271 = scmp.ge.s32.totalorder %s270, 1
          %s275 = sphi %s265, %s265
          %s276 = sphi %s267, %s267
        $region159: #{tpu_custom_call.1} parent=155 // loop_header_branch
          %273 = sbr.rel (%p271) target = $region163
        $region160: #{tpu_custom_call.1} parent=155 // loop_body
          %v277 = vld [vmem:[%s275] sm:%s268]
          %278 = vst [vmem:[%s276] sm:%s268] %v277
        $region161: #{tpu_custom_call.1} parent=155 // loop_footer
          %s274 = sadd.s32 1, %s270
        $region162: #{tpu_custom_call.1} parent=155 // loop_footer_branch
          %269 = sbr.rel target = $region158
        $region163: #{tpu_custom_call.1} parent=155 // loop_exit
          _
      $region156: #{tpu_custom_call.1} parent=140 // pred_fallthru
        _
    $region141: #{tpu_custom_call.1} parent=1 // pred_fallthru
      _
    // Predicated region
    $region142: #{tpu_custom_call.1} parent=1 // pred_check
      %p244 = pneg %p240
    $region143: #{tpu_custom_call.1} parent=1 // pred_check_branch
      %246 = sbr.rel (%p244) target = $region145
    $region144: #{tpu_custom_call.1} parent=1 // pred_region
      %s247 = sshllo.u32 0, 1
      loop: start=0, step=1, limit=1
      $region146: #{tpu_custom_call.1} parent=144 // loop_pre_header
        _
      $region147: #{tpu_custom_call.1} parent=144 // loop_header
        %s249 = sphi 0, %s253
        %p250 = scmp.ge.s32.totalorder %s249, 1
        %s254 = sphi %s237, %s237
        %s255 = sphi %s238, %s238
      $region148: #{tpu_custom_call.1} parent=144 // loop_header_branch
        %252 = sbr.rel (%p250) target = $region152
      $region149: #{tpu_custom_call.1} parent=144 // loop_body
        %v256 = vld [vmem:[%s254] sm:%s247]
        %257 = vst [vmem:[%s255] sm:%s247] %v256
      $region150: #{tpu_custom_call.1} parent=144 // loop_footer
        %s253 = sadd.s32 1, %s249
      $region151: #{tpu_custom_call.1} parent=144 // loop_footer_branch
        %248 = sbr.rel target = $region147
      $region152: #{tpu_custom_call.1} parent=144 // loop_exit
        _
    $region145: #{tpu_custom_call.1} parent=1 // pred_fallthru
      _
    // Predicated region
    $region164: #{tpu_custom_call.1} parent=1 // pred_check
      _
    $region165: #{tpu_custom_call.1} parent=1 // pred_check_branch
      %281 = sbr.rel (0) target = $region167
    $region166: #{tpu_custom_call.1} parent=1 // pred_region
      %282 = vsyncadd [#allocation3], 16
    $region167: #{tpu_custom_call.1} parent=1 // pred_fallthru
      _
    %s283 = scalar_lea.vmem %s1, %s43
    %s284 = scalar_lea.vmem [#allocation2], 5
    %p286 = scmp.lt.u32.totalorder 1, 8
    %p287 = pneg %p286
    // Predicated region
    $region168: #{tpu_custom_call.1} parent=1 // pred_check
      _
    $region169: #{tpu_custom_call.1} parent=1 // pred_check_branch
      %289 = sbr.rel (%p286) target = $region171
    $region170: #{tpu_custom_call.1} parent=1 // pred_region
      %s304 = sand.u32 1, 7
      %p305 = scmp.eq.s32.totalorder %s304, 0
      %p306 = pneg %p305
      // Predicated region
      $region183: #{tpu_custom_call.1} parent=170 // pred_check
        _
      $region184: #{tpu_custom_call.1} parent=170 // pred_check_branch
        %308 = sbr.rel (%p305) target = $region186
      $region185: #{tpu_custom_call.1} parent=170 // pred_region
        %s309 = sand.u32 1, 7
        %s310 = ssub.s32 1, %s309
        %s311 = scalar_lea.vmem %s283, %s310
        %s312 = ssub.s32 1, %s309
        %s313 = scalar_lea.vmem %s284, %s312 [#allocation2]
        %s314 = sshllo.u32 0, %s309
        loop: start=0, step=1, limit=1
        $region187: #{tpu_custom_call.1} parent=185 // loop_pre_header
          _
        $region188: #{tpu_custom_call.1} parent=185 // loop_header
          %s316 = sphi 0, %s320
          %p317 = scmp.ge.s32.totalorder %s316, 1
          %s321 = sphi %s311, %s311
          %s322 = sphi %s313, %s313
        $region189: #{tpu_custom_call.1} parent=185 // loop_header_branch
          %319 = sbr.rel (%p317) target = $region193
        $region190: #{tpu_custom_call.1} parent=185 // loop_body
          %v323 = vld [vmem:[%s321] sm:%s314]
          %324 = vst [vmem:[%s322] sm:%s314] %v323
        $region191: #{tpu_custom_call.1} parent=185 // loop_footer
          %s320 = sadd.s32 1, %s316
        $region192: #{tpu_custom_call.1} parent=185 // loop_footer_branch
          %315 = sbr.rel target = $region188
        $region193: #{tpu_custom_call.1} parent=185 // loop_exit
          _
      $region186: #{tpu_custom_call.1} parent=170 // pred_fallthru
        _
    $region171: #{tpu_custom_call.1} parent=1 // pred_fallthru
      _
    // Predicated region
    $region172: #{tpu_custom_call.1} parent=1 // pred_check
      %p290 = pneg %p286
    $region173: #{tpu_custom_call.1} parent=1 // pred_check_branch
      %292 = sbr.rel (%p290) target = $region175
    $region174: #{tpu_custom_call.1} parent=1 // pred_region
      %s293 = sshllo.u32 0, 1
      loop: start=0, step=1, limit=1
      $region176: #{tpu_custom_call.1} parent=174 // loop_pre_header
        _
      $region177: #{tpu_custom_call.1} parent=174 // loop_header
        %s295 = sphi 0, %s299
        %p296 = scmp.ge.s32.totalorder %s295, 1
        %s300 = sphi %s283, %s283
        %s301 = sphi %s284, %s284
      $region178: #{tpu_custom_call.1} parent=174 // loop_header_branch
        %298 = sbr.rel (%p296) target = $region182
      $region179: #{tpu_custom_call.1} parent=174 // loop_body
        %v302 = vld [vmem:[%s300] sm:%s293]
        %303 = vst [vmem:[%s301] sm:%s293] %v302
      $region180: #{tpu_custom_call.1} parent=174 // loop_footer
        %s299 = sadd.s32 1, %s295
      $region181: #{tpu_custom_call.1} parent=174 // loop_footer_branch
        %294 = sbr.rel target = $region177
      $region182: #{tpu_custom_call.1} parent=174 // loop_exit
        _
    $region175: #{tpu_custom_call.1} parent=1 // pred_fallthru
      _
    // Predicated region
    $region194: #{tpu_custom_call.1} parent=1 // pred_check
      _
    $region195: #{tpu_custom_call.1} parent=1 // pred_check_branch
      %327 = sbr.rel (0) target = $region197
    $region196: #{tpu_custom_call.1} parent=1 // pred_region
      %328 = vsyncadd [#allocation3], 16
    $region197: #{tpu_custom_call.1} parent=1 // pred_fallthru
      _
    %s329 = scalar_lea.vmem %s1, %s44
    %s330 = scalar_lea.vmem [#allocation2], 6
    %p332 = scmp.lt.u32.totalorder 1, 8
    %p333 = pneg %p332
    // Predicated region
    $region198: #{tpu_custom_call.1} parent=1 // pred_check
      _
    $region199: #{tpu_custom_call.1} parent=1 // pred_check_branch
      %335 = sbr.rel (%p332) target = $region201
    $region200: #{tpu_custom_call.1} parent=1 // pred_region
      %s350 = sand.u32 1, 7
      %p351 = scmp.eq.s32.totalorder %s350, 0
      %p352 = pneg %p351
      // Predicated region
      $region213: #{tpu_custom_call.1} parent=200 // pred_check
        _
      $region214: #{tpu_custom_call.1} parent=200 // pred_check_branch
        %354 = sbr.rel (%p351) target = $region216
      $region215: #{tpu_custom_call.1} parent=200 // pred_region
        %s355 = sand.u32 1, 7
        %s356 = ssub.s32 1, %s355
        %s357 = scalar_lea.vmem %s329, %s356
        %s358 = ssub.s32 1, %s355
        %s359 = scalar_lea.vmem %s330, %s358 [#allocation2]
        %s360 = sshllo.u32 0, %s355
        loop: start=0, step=1, limit=1
        $region217: #{tpu_custom_call.1} parent=215 // loop_pre_header
          _
        $region218: #{tpu_custom_call.1} parent=215 // loop_header
          %s362 = sphi 0, %s366
          %p363 = scmp.ge.s32.totalorder %s362, 1
          %s367 = sphi %s357, %s357
          %s368 = sphi %s359, %s359
        $region219: #{tpu_custom_call.1} parent=215 // loop_header_branch
          %365 = sbr.rel (%p363) target = $region223
        $region220: #{tpu_custom_call.1} parent=215 // loop_body
          %v369 = vld [vmem:[%s367] sm:%s360]
          %370 = vst [vmem:[%s368] sm:%s360] %v369
        $region221: #{tpu_custom_call.1} parent=215 // loop_footer
          %s366 = sadd.s32 1, %s362
        $region222: #{tpu_custom_call.1} parent=215 // loop_footer_branch
          %361 = sbr.rel target = $region218
        $region223: #{tpu_custom_call.1} parent=215 // loop_exit
          _
      $region216: #{tpu_custom_call.1} parent=200 // pred_fallthru
        _
    $region201: #{tpu_custom_call.1} parent=1 // pred_fallthru
      _
    // Predicated region
    $region202: #{tpu_custom_call.1} parent=1 // pred_check
      %p336 = pneg %p332
    $region203: #{tpu_custom_call.1} parent=1 // pred_check_branch
      %338 = sbr.rel (%p336) target = $region205
    $region204: #{tpu_custom_call.1} parent=1 // pred_region
      %s339 = sshllo.u32 0, 1
      loop: start=0, step=1, limit=1
      $region206: #{tpu_custom_call.1} parent=204 // loop_pre_header
        _
      $region207: #{tpu_custom_call.1} parent=204 // loop_header
        %s341 = sphi 0, %s345
        %p342 = scmp.ge.s32.totalorder %s341, 1
        %s346 = sphi %s329, %s329
        %s347 = sphi %s330, %s330
      $region208: #{tpu_custom_call.1} parent=204 // loop_header_branch
        %344 = sbr.rel (%p342) target = $region212
      $region209: #{tpu_custom_call.1} parent=204 // loop_body
        %v348 = vld [vmem:[%s346] sm:%s339]
        %349 = vst [vmem:[%s347] sm:%s339] %v348
      $region210: #{tpu_custom_call.1} parent=204 // loop_footer
        %s345 = sadd.s32 1, %s341
      $region211: #{tpu_custom_call.1} parent=204 // loop_footer_branch
        %340 = sbr.rel target = $region207
      $region212: #{tpu_custom_call.1} parent=204 // loop_exit
        _
    $region205: #{tpu_custom_call.1} parent=1 // pred_fallthru
      _
    // Predicated region
    $region224: #{tpu_custom_call.1} parent=1 // pred_check
      _
    $region225: #{tpu_custom_call.1} parent=1 // pred_check_branch
      %373 = sbr.rel (0) target = $region227
    $region226: #{tpu_custom_call.1} parent=1 // pred_region
      %374 = vsyncadd [#allocation3], 16
    $region227: #{tpu_custom_call.1} parent=1 // pred_fallthru
      _
    %s375 = scalar_lea.vmem %s1, %s45
    %s376 = scalar_lea.vmem [#allocation2], 7
    %p378 = scmp.lt.u32.totalorder 1, 8
    %p379 = pneg %p378
    // Predicated region
    $region228: #{tpu_custom_call.1} parent=1 // pred_check
      _
    $region229: #{tpu_custom_call.1} parent=1 // pred_check_branch
      %381 = sbr.rel (%p378) target = $region231
    $region230: #{tpu_custom_call.1} parent=1 // pred_region
      %s396 = sand.u32 1, 7
      %p397 = scmp.eq.s32.totalorder %s396, 0
      %p398 = pneg %p397
      // Predicated region
      $region243: #{tpu_custom_call.1} parent=230 // pred_check
        _
      $region244: #{tpu_custom_call.1} parent=230 // pred_check_branch
        %400 = sbr.rel (%p397) target = $region246
      $region245: #{tpu_custom_call.1} parent=230 // pred_region
        %s401 = sand.u32 1, 7
        %s402 = ssub.s32 1, %s401
        %s403 = scalar_lea.vmem %s375, %s402
        %s404 = ssub.s32 1, %s401
        %s405 = scalar_lea.vmem %s376, %s404 [#allocation2]
        %s406 = sshllo.u32 0, %s401
        loop: start=0, step=1, limit=1
        $region247: #{tpu_custom_call.1} parent=245 // loop_pre_header
          _
        $region248: #{tpu_custom_call.1} parent=245 // loop_header
          %s408 = sphi 0, %s412
          %p409 = scmp.ge.s32.totalorder %s408, 1
          %s413 = sphi %s403, %s403
          %s414 = sphi %s405, %s405
        $region249: #{tpu_custom_call.1} parent=245 // loop_header_branch
          %411 = sbr.rel (%p409) target = $region253
        $region250: #{tpu_custom_call.1} parent=245 // loop_body
          %v415 = vld [vmem:[%s413] sm:%s406]
          %416 = vst [vmem:[%s414] sm:%s406] %v415
        $region251: #{tpu_custom_call.1} parent=245 // loop_footer
          %s412 = sadd.s32 1, %s408
        $region252: #{tpu_custom_call.1} parent=245 // loop_footer_branch
          %407 = sbr.rel target = $region248
        $region253: #{tpu_custom_call.1} parent=245 // loop_exit
          _
      $region246: #{tpu_custom_call.1} parent=230 // pred_fallthru
        _
    $region231: #{tpu_custom_call.1} parent=1 // pred_fallthru
      _
    // Predicated region
    $region232: #{tpu_custom_call.1} parent=1 // pred_check
      %p382 = pneg %p378
    $region233: #{tpu_custom_call.1} parent=1 // pred_check_branch
      %384 = sbr.rel (%p382) target = $region235
    $region234: #{tpu_custom_call.1} parent=1 // pred_region
      %s385 = sshllo.u32 0, 1
      loop: start=0, step=1, limit=1
      $region236: #{tpu_custom_call.1} parent=234 // loop_pre_header
        _
      $region237: #{tpu_custom_call.1} parent=234 // loop_header
        %s387 = sphi 0, %s391
        %p388 = scmp.ge.s32.totalorder %s387, 1
        %s392 = sphi %s375, %s375
        %s393 = sphi %s376, %s376
      $region238: #{tpu_custom_call.1} parent=234 // loop_header_branch
        %390 = sbr.rel (%p388) target = $region242
      $region239: #{tpu_custom_call.1} parent=234 // loop_body
        %v394 = vld [vmem:[%s392] sm:%s385]
        %395 = vst [vmem:[%s393] sm:%s385] %v394
      $region240: #{tpu_custom_call.1} parent=234 // loop_footer
        %s391 = sadd.s32 1, %s387
      $region241: #{tpu_custom_call.1} parent=234 // loop_footer_branch
        %386 = sbr.rel target = $region237
      $region242: #{tpu_custom_call.1} parent=234 // loop_exit
        _
    $region235: #{tpu_custom_call.1} parent=1 // pred_fallthru
      _
    // Predicated region
    $region254: #{tpu_custom_call.1} parent=1 // pred_check
      _
    $region255: #{tpu_custom_call.1} parent=1 // pred_check_branch
      %419 = sbr.rel (0) target = $region257
    $region256: #{tpu_custom_call.1} parent=1 // pred_region
      %420 = vsyncadd [#allocation3], 16
    $region257: #{tpu_custom_call.1} parent=1 // pred_fallthru
      _
    %s421 = scalar_lea.vmem %s1, %s46
    %s422 = scalar_lea.vmem [#allocation2], 8
    %p424 = scmp.lt.u32.totalorder 1, 8
    %p425 = pneg %p424
    // Predicated region
    $region258: #{tpu_custom_call.1} parent=1 // pred_check
      _
    $region259: #{tpu_custom_call.1} parent=1 // pred_check_branch
      %427 = sbr.rel (%p424) target = $region261
    $region260: #{tpu_custom_call.1} parent=1 // pred_region
      %s442 = sand.u32 1, 7
      %p443 = scmp.eq.s32.totalorder %s442, 0
      %p444 = pneg %p443
      // Predicated region
      $region273: #{tpu_custom_call.1} parent=260 // pred_check
        _
      $region274: #{tpu_custom_call.1} parent=260 // pred_check_branch
        %446 = sbr.rel (%p443) target = $region276
      $region275: #{tpu_custom_call.1} parent=260 // pred_region
        %s447 = sand.u32 1, 7
        %s448 = ssub.s32 1, %s447
        %s449 = scalar_lea.vmem %s421, %s448
        %s450 = ssub.s32 1, %s447
        %s451 = scalar_lea.vmem %s422, %s450 [#allocation2]
        %s452 = sshllo.u32 0, %s447
        loop: start=0, step=1, limit=1
        $region277: #{tpu_custom_call.1} parent=275 // loop_pre_header
          _
        $region278: #{tpu_custom_call.1} parent=275 // loop_header
          %s454 = sphi 0, %s458
          %p455 = scmp.ge.s32.totalorder %s454, 1
          %s459 = sphi %s449, %s449
          %s460 = sphi %s451, %s451
        $region279: #{tpu_custom_call.1} parent=275 // loop_header_branch
          %457 = sbr.rel (%p455) target = $region283
        $region280: #{tpu_custom_call.1} parent=275 // loop_body
          %v461 = vld [vmem:[%s459] sm:%s452]
          %462 = vst [vmem:[%s460] sm:%s452] %v461
        $region281: #{tpu_custom_call.1} parent=275 // loop_footer
          %s458 = sadd.s32 1, %s454
        $region282: #{tpu_custom_call.1} parent=275 // loop_footer_branch
          %453 = sbr.rel target = $region278
        $region283: #{tpu_custom_call.1} parent=275 // loop_exit
          _
      $region276: #{tpu_custom_call.1} parent=260 // pred_fallthru
        _
    $region261: #{tpu_custom_call.1} parent=1 // pred_fallthru
      _
    // Predicated region
    $region262: #{tpu_custom_call.1} parent=1 // pred_check
      %p428 = pneg %p424
    $region263: #{tpu_custom_call.1} parent=1 // pred_check_branch
      %430 = sbr.rel (%p428) target = $region265
    $region264: #{tpu_custom_call.1} parent=1 // pred_region
      %s431 = sshllo.u32 0, 1
      loop: start=0, step=1, limit=1
      $region266: #{tpu_custom_call.1} parent=264 // loop_pre_header
        _
      $region267: #{tpu_custom_call.1} parent=264 // loop_header
        %s433 = sphi 0, %s437
        %p434 = scmp.ge.s32.totalorder %s433, 1
        %s438 = sphi %s421, %s421
        %s439 = sphi %s422, %s422
      $region268: #{tpu_custom_call.1} parent=264 // loop_header_branch
        %436 = sbr.rel (%p434) target = $region272
      $region269: #{tpu_custom_call.1} parent=264 // loop_body
        %v440 = vld [vmem:[%s438] sm:%s431]
        %441 = vst [vmem:[%s439] sm:%s431] %v440
      $region270: #{tpu_custom_call.1} parent=264 // loop_footer
        %s437 = sadd.s32 1, %s433
      $region271: #{tpu_custom_call.1} parent=264 // loop_footer_branch
        %432 = sbr.rel target = $region267
      $region272: #{tpu_custom_call.1} parent=264 // loop_exit
        _
    $region265: #{tpu_custom_call.1} parent=1 // pred_fallthru
      _
    // Predicated region
    $region284: #{tpu_custom_call.1} parent=1 // pred_check
      _
    $region285: #{tpu_custom_call.1} parent=1 // pred_check_branch
      %465 = sbr.rel (0) target = $region287
    $region286: #{tpu_custom_call.1} parent=1 // pred_region
      %466 = vsyncadd [#allocation3], 16
    $region287: #{tpu_custom_call.1} parent=1 // pred_fallthru
      _
    %s467 = scalar_lea.vmem %s1, %s47
    %s468 = scalar_lea.vmem [#allocation2], 9
    %p470 = scmp.lt.u32.totalorder 1, 8
    %p471 = pneg %p470
    // Predicated region
    $region288: #{tpu_custom_call.1} parent=1 // pred_check
      _
    $region289: #{tpu_custom_call.1} parent=1 // pred_check_branch
      %473 = sbr.rel (%p470) target = $region291
    $region290: #{tpu_custom_call.1} parent=1 // pred_region
      %s488 = sand.u32 1, 7
      %p489 = scmp.eq.s32.totalorder %s488, 0
      %p490 = pneg %p489
      // Predicated region
      $region303: #{tpu_custom_call.1} parent=290 // pred_check
        _
      $region304: #{tpu_custom_call.1} parent=290 // pred_check_branch
        %492 = sbr.rel (%p489) target = $region306
      $region305: #{tpu_custom_call.1} parent=290 // pred_region
        %s493 = sand.u32 1, 7
        %s494 = ssub.s32 1, %s493
        %s495 = scalar_lea.vmem %s467, %s494
        %s496 = ssub.s32 1, %s493
        %s497 = scalar_lea.vmem %s468, %s496 [#allocation2]
        %s498 = sshllo.u32 0, %s493
        loop: start=0, step=1, limit=1
        $region307: #{tpu_custom_call.1} parent=305 // loop_pre_header
          _
        $region308: #{tpu_custom_call.1} parent=305 // loop_header
          %s500 = sphi 0, %s504
          %p501 = scmp.ge.s32.totalorder %s500, 1
          %s505 = sphi %s495, %s495
          %s506 = sphi %s497, %s497
        $region309: #{tpu_custom_call.1} parent=305 // loop_header_branch
          %503 = sbr.rel (%p501) target = $region313
        $region310: #{tpu_custom_call.1} parent=305 // loop_body
          %v507 = vld [vmem:[%s505] sm:%s498]
          %508 = vst [vmem:[%s506] sm:%s498] %v507
        $region311: #{tpu_custom_call.1} parent=305 // loop_footer
          %s504 = sadd.s32 1, %s500
        $region312: #{tpu_custom_call.1} parent=305 // loop_footer_branch
          %499 = sbr.rel target = $region308
        $region313: #{tpu_custom_call.1} parent=305 // loop_exit
          _
      $region306: #{tpu_custom_call.1} parent=290 // pred_fallthru
        _
    $region291: #{tpu_custom_call.1} parent=1 // pred_fallthru
      _
    // Predicated region
    $region292: #{tpu_custom_call.1} parent=1 // pred_check
      %p474 = pneg %p470
    $region293: #{tpu_custom_call.1} parent=1 // pred_check_branch
      %476 = sbr.rel (%p474) target = $region295
    $region294: #{tpu_custom_call.1} parent=1 // pred_region
      %s477 = sshllo.u32 0, 1
      loop: start=0, step=1, limit=1
      $region296: #{tpu_custom_call.1} parent=294 // loop_pre_header
        _
      $region297: #{tpu_custom_call.1} parent=294 // loop_header
        %s479 = sphi 0, %s483
        %p480 = scmp.ge.s32.totalorder %s479, 1
        %s484 = sphi %s467, %s467
        %s485 = sphi %s468, %s468
      $region298: #{tpu_custom_call.1} parent=294 // loop_header_branch
        %482 = sbr.rel (%p480) target = $region302
      $region299: #{tpu_custom_call.1} parent=294 // loop_body
        %v486 = vld [vmem:[%s484] sm:%s477]
        %487 = vst [vmem:[%s485] sm:%s477] %v486
      $region300: #{tpu_custom_call.1} parent=294 // loop_footer
        %s483 = sadd.s32 1, %s479
      $region301: #{tpu_custom_call.1} parent=294 // loop_footer_branch
        %478 = sbr.rel target = $region297
      $region302: #{tpu_custom_call.1} parent=294 // loop_exit
        _
    $region295: #{tpu_custom_call.1} parent=1 // pred_fallthru
      _
    // Predicated region
    $region314: #{tpu_custom_call.1} parent=1 // pred_check
      _
    $region315: #{tpu_custom_call.1} parent=1 // pred_check_branch
      %511 = sbr.rel (0) target = $region317
    $region316: #{tpu_custom_call.1} parent=1 // pred_region
      %512 = vsyncadd [#allocation3], 16
    $region317: #{tpu_custom_call.1} parent=1 // pred_fallthru
      _
    %s513 = scalar_lea.vmem %s1, %s48
    %s514 = scalar_lea.vmem [#allocation2], 10
    %p516 = scmp.lt.u32.totalorder 1, 8
    %p517 = pneg %p516
    // Predicated region
    $region318: #{tpu_custom_call.1} parent=1 // pred_check
      _
    $region319: #{tpu_custom_call.1} parent=1 // pred_check_branch
      %519 = sbr.rel (%p516) target = $region321
    $region320: #{tpu_custom_call.1} parent=1 // pred_region
      %s534 = sand.u32 1, 7
      %p535 = scmp.eq.s32.totalorder %s534, 0
      %p536 = pneg %p535
      // Predicated region
      $region333: #{tpu_custom_call.1} parent=320 // pred_check
        _
      $region334: #{tpu_custom_call.1} parent=320 // pred_check_branch
        %538 = sbr.rel (%p535) target = $region336
      $region335: #{tpu_custom_call.1} parent=320 // pred_region
        %s539 = sand.u32 1, 7
        %s540 = ssub.s32 1, %s539
        %s541 = scalar_lea.vmem %s513, %s540
        %s542 = ssub.s32 1, %s539
        %s543 = scalar_lea.vmem %s514, %s542 [#allocation2]
        %s544 = sshllo.u32 0, %s539
        loop: start=0, step=1, limit=1
        $region337: #{tpu_custom_call.1} parent=335 // loop_pre_header
          _
        $region338: #{tpu_custom_call.1} parent=335 // loop_header
          %s546 = sphi 0, %s550
          %p547 = scmp.ge.s32.totalorder %s546, 1
          %s551 = sphi %s541, %s541
          %s552 = sphi %s543, %s543
        $region339: #{tpu_custom_call.1} parent=335 // loop_header_branch
          %549 = sbr.rel (%p547) target = $region343
        $region340: #{tpu_custom_call.1} parent=335 // loop_body
          %v553 = vld [vmem:[%s551] sm:%s544]
          %554 = vst [vmem:[%s552] sm:%s544] %v553
        $region341: #{tpu_custom_call.1} parent=335 // loop_footer
          %s550 = sadd.s32 1, %s546
        $region342: #{tpu_custom_call.1} parent=335 // loop_footer_branch
          %545 = sbr.rel target = $region338
        $region343: #{tpu_custom_call.1} parent=335 // loop_exit
          _
      $region336: #{tpu_custom_call.1} parent=320 // pred_fallthru
        _
    $region321: #{tpu_custom_call.1} parent=1 // pred_fallthru
      _
    // Predicated region
    $region322: #{tpu_custom_call.1} parent=1 // pred_check
      %p520 = pneg %p516
    $region323: #{tpu_custom_call.1} parent=1 // pred_check_branch
      %522 = sbr.rel (%p520) target = $region325
    $region324: #{tpu_custom_call.1} parent=1 // pred_region
      %s523 = sshllo.u32 0, 1
      loop: start=0, step=1, limit=1
      $region326: #{tpu_custom_call.1} parent=324 // loop_pre_header
        _
      $region327: #{tpu_custom_call.1} parent=324 // loop_header
        %s525 = sphi 0, %s529
        %p526 = scmp.ge.s32.totalorder %s525, 1
        %s530 = sphi %s513, %s513
        %s531 = sphi %s514, %s514
      $region328: #{tpu_custom_call.1} parent=324 // loop_header_branch
        %528 = sbr.rel (%p526) target = $region332
      $region329: #{tpu_custom_call.1} parent=324 // loop_body
        %v532 = vld [vmem:[%s530] sm:%s523]
        %533 = vst [vmem:[%s531] sm:%s523] %v532
      $region330: #{tpu_custom_call.1} parent=324 // loop_footer
        %s529 = sadd.s32 1, %s525
      $region331: #{tpu_custom_call.1} parent=324 // loop_footer_branch
        %524 = sbr.rel target = $region327
      $region332: #{tpu_custom_call.1} parent=324 // loop_exit
        _
    $region325: #{tpu_custom_call.1} parent=1 // pred_fallthru
      _
    // Predicated region
    $region344: #{tpu_custom_call.1} parent=1 // pred_check
      _
    $region345: #{tpu_custom_call.1} parent=1 // pred_check_branch
      %557 = sbr.rel (0) target = $region347
    $region346: #{tpu_custom_call.1} parent=1 // pred_region
      %558 = vsyncadd [#allocation3], 16
    $region347: #{tpu_custom_call.1} parent=1 // pred_fallthru
      _
    %s559 = scalar_lea.vmem %s1, %s49
    %s560 = scalar_lea.vmem [#allocation2], 11
    %p562 = scmp.lt.u32.totalorder 1, 8
    %p563 = pneg %p562
    // Predicated region
    $region348: #{tpu_custom_call.1} parent=1 // pred_check
      _
    $region349: #{tpu_custom_call.1} parent=1 // pred_check_branch
      %565 = sbr.rel (%p562) target = $region351
    $region350: #{tpu_custom_call.1} parent=1 // pred_region
      %s580 = sand.u32 1, 7
      %p581 = scmp.eq.s32.totalorder %s580, 0
      %p582 = pneg %p581
      // Predicated region
      $region363: #{tpu_custom_call.1} parent=350 // pred_check
        _
      $region364: #{tpu_custom_call.1} parent=350 // pred_check_branch
        %584 = sbr.rel (%p581) target = $region366
      $region365: #{tpu_custom_call.1} parent=350 // pred_region
        %s585 = sand.u32 1, 7
        %s586 = ssub.s32 1, %s585
        %s587 = scalar_lea.vmem %s559, %s586
        %s588 = ssub.s32 1, %s585
        %s589 = scalar_lea.vmem %s560, %s588 [#allocation2]
        %s590 = sshllo.u32 0, %s585
        loop: start=0, step=1, limit=1
        $region367: #{tpu_custom_call.1} parent=365 // loop_pre_header
          _
        $region368: #{tpu_custom_call.1} parent=365 // loop_header
          %s592 = sphi 0, %s596
          %p593 = scmp.ge.s32.totalorder %s592, 1
          %s597 = sphi %s587, %s587
          %s598 = sphi %s589, %s589
        $region369: #{tpu_custom_call.1} parent=365 // loop_header_branch
          %595 = sbr.rel (%p593) target = $region373
        $region370: #{tpu_custom_call.1} parent=365 // loop_body
          %v599 = vld [vmem:[%s597] sm:%s590]
          %600 = vst [vmem:[%s598] sm:%s590] %v599
        $region371: #{tpu_custom_call.1} parent=365 // loop_footer
          %s596 = sadd.s32 1, %s592
        $region372: #{tpu_custom_call.1} parent=365 // loop_footer_branch
          %591 = sbr.rel target = $region368
        $region373: #{tpu_custom_call.1} parent=365 // loop_exit
          _
      $region366: #{tpu_custom_call.1} parent=350 // pred_fallthru
        _
    $region351: #{tpu_custom_call.1} parent=1 // pred_fallthru
      _
    // Predicated region
    $region352: #{tpu_custom_call.1} parent=1 // pred_check
      %p566 = pneg %p562
    $region353: #{tpu_custom_call.1} parent=1 // pred_check_branch
      %568 = sbr.rel (%p566) target = $region355
    $region354: #{tpu_custom_call.1} parent=1 // pred_region
      %s569 = sshllo.u32 0, 1
      loop: start=0, step=1, limit=1
      $region356: #{tpu_custom_call.1} parent=354 // loop_pre_header
        _
      $region357: #{tpu_custom_call.1} parent=354 // loop_header
        %s571 = sphi 0, %s575
        %p572 = scmp.ge.s32.totalorder %s571, 1
        %s576 = sphi %s559, %s559
        %s577 = sphi %s560, %s560
      $region358: #{tpu_custom_call.1} parent=354 // loop_header_branch
        %574 = sbr.rel (%p572) target = $region362
      $region359: #{tpu_custom_call.1} parent=354 // loop_body
        %v578 = vld [vmem:[%s576] sm:%s569]
        %579 = vst [vmem:[%s577] sm:%s569] %v578
      $region360: #{tpu_custom_call.1} parent=354 // loop_footer
        %s575 = sadd.s32 1, %s571
      $region361: #{tpu_custom_call.1} parent=354 // loop_footer_branch
        %570 = sbr.rel target = $region357
      $region362: #{tpu_custom_call.1} parent=354 // loop_exit
        _
    $region355: #{tpu_custom_call.1} parent=1 // pred_fallthru
      _
    // Predicated region
    $region374: #{tpu_custom_call.1} parent=1 // pred_check
      _
    $region375: #{tpu_custom_call.1} parent=1 // pred_check_branch
      %603 = sbr.rel (0) target = $region377
    $region376: #{tpu_custom_call.1} parent=1 // pred_region
      %604 = vsyncadd [#allocation3], 16
    $region377: #{tpu_custom_call.1} parent=1 // pred_fallthru
      _
    %s605 = scalar_lea.vmem %s1, %s50
    %s606 = scalar_lea.vmem [#allocation2], 12
    %p608 = scmp.lt.u32.totalorder 1, 8
    %p609 = pneg %p608
    // Predicated region
    $region378: #{tpu_custom_call.1} parent=1 // pred_check
      _
    $region379: #{tpu_custom_call.1} parent=1 // pred_check_branch
      %611 = sbr.rel (%p608) target = $region381
    $region380: #{tpu_custom_call.1} parent=1 // pred_region
      %s626 = sand.u32 1, 7
      %p627 = scmp.eq.s32.totalorder %s626, 0
      %p628 = pneg %p627
      // Predicated region
      $region393: #{tpu_custom_call.1} parent=380 // pred_check
        _
      $region394: #{tpu_custom_call.1} parent=380 // pred_check_branch
        %630 = sbr.rel (%p627) target = $region396
      $region395: #{tpu_custom_call.1} parent=380 // pred_region
        %s631 = sand.u32 1, 7
        %s632 = ssub.s32 1, %s631
        %s633 = scalar_lea.vmem %s605, %s632
        %s634 = ssub.s32 1, %s631
        %s635 = scalar_lea.vmem %s606, %s634 [#allocation2]
        %s636 = sshllo.u32 0, %s631
        loop: start=0, step=1, limit=1
        $region397: #{tpu_custom_call.1} parent=395 // loop_pre_header
          _
        $region398: #{tpu_custom_call.1} parent=395 // loop_header
          %s638 = sphi 0, %s642
          %p639 = scmp.ge.s32.totalorder %s638, 1
          %s643 = sphi %s633, %s633
          %s644 = sphi %s635, %s635
        $region399: #{tpu_custom_call.1} parent=395 // loop_header_branch
          %641 = sbr.rel (%p639) target = $region403
        $region400: #{tpu_custom_call.1} parent=395 // loop_body
          %v645 = vld [vmem:[%s643] sm:%s636]
          %646 = vst [vmem:[%s644] sm:%s636] %v645
        $region401: #{tpu_custom_call.1} parent=395 // loop_footer
          %s642 = sadd.s32 1, %s638
        $region402: #{tpu_custom_call.1} parent=395 // loop_footer_branch
          %637 = sbr.rel target = $region398
        $region403: #{tpu_custom_call.1} parent=395 // loop_exit
          _
      $region396: #{tpu_custom_call.1} parent=380 // pred_fallthru
        _
    $region381: #{tpu_custom_call.1} parent=1 // pred_fallthru
      _
    // Predicated region
    $region382: #{tpu_custom_call.1} parent=1 // pred_check
      %p612 = pneg %p608
    $region383: #{tpu_custom_call.1} parent=1 // pred_check_branch
      %614 = sbr.rel (%p612) target = $region385
    $region384: #{tpu_custom_call.1} parent=1 // pred_region
      %s615 = sshllo.u32 0, 1
      loop: start=0, step=1, limit=1
      $region386: #{tpu_custom_call.1} parent=384 // loop_pre_header
        _
      $region387: #{tpu_custom_call.1} parent=384 // loop_header
        %s617 = sphi 0, %s621
        %p618 = scmp.ge.s32.totalorder %s617, 1
        %s622 = sphi %s605, %s605
        %s623 = sphi %s606, %s606
      $region388: #{tpu_custom_call.1} parent=384 // loop_header_branch
        %620 = sbr.rel (%p618) target = $region392
      $region389: #{tpu_custom_call.1} parent=384 // loop_body
        %v624 = vld [vmem:[%s622] sm:%s615]
        %625 = vst [vmem:[%s623] sm:%s615] %v624
      $region390: #{tpu_custom_call.1} parent=384 // loop_footer
        %s621 = sadd.s32 1, %s617
      $region391: #{tpu_custom_call.1} parent=384 // loop_footer_branch
        %616 = sbr.rel target = $region387
      $region392: #{tpu_custom_call.1} parent=384 // loop_exit
        _
    $region385: #{tpu_custom_call.1} parent=1 // pred_fallthru
      _
    // Predicated region
    $region404: #{tpu_custom_call.1} parent=1 // pred_check
      _
    $region405: #{tpu_custom_call.1} parent=1 // pred_check_branch
      %649 = sbr.rel (0) target = $region407
    $region406: #{tpu_custom_call.1} parent=1 // pred_region
      %650 = vsyncadd [#allocation3], 16
    $region407: #{tpu_custom_call.1} parent=1 // pred_fallthru
      _
    %s651 = scalar_lea.vmem %s1, %s51
    %s652 = scalar_lea.vmem [#allocation2], 13
    %p654 = scmp.lt.u32.totalorder 1, 8
    %p655 = pneg %p654
    // Predicated region
    $region408: #{tpu_custom_call.1} parent=1 // pred_check
      _
    $region409: #{tpu_custom_call.1} parent=1 // pred_check_branch
      %657 = sbr.rel (%p654) target = $region411
    $region410: #{tpu_custom_call.1} parent=1 // pred_region
      %s672 = sand.u32 1, 7
      %p673 = scmp.eq.s32.totalorder %s672, 0
      %p674 = pneg %p673
      // Predicated region
      $region423: #{tpu_custom_call.1} parent=410 // pred_check
        _
      $region424: #{tpu_custom_call.1} parent=410 // pred_check_branch
        %676 = sbr.rel (%p673) target = $region426
      $region425: #{tpu_custom_call.1} parent=410 // pred_region
        %s677 = sand.u32 1, 7
        %s678 = ssub.s32 1, %s677
        %s679 = scalar_lea.vmem %s651, %s678
        %s680 = ssub.s32 1, %s677
        %s681 = scalar_lea.vmem %s652, %s680 [#allocation2]
        %s682 = sshllo.u32 0, %s677
        loop: start=0, step=1, limit=1
        $region427: #{tpu_custom_call.1} parent=425 // loop_pre_header
          _
        $region428: #{tpu_custom_call.1} parent=425 // loop_header
          %s684 = sphi 0, %s688
          %p685 = scmp.ge.s32.totalorder %s684, 1
          %s689 = sphi %s679, %s679
          %s690 = sphi %s681, %s681
        $region429: #{tpu_custom_call.1} parent=425 // loop_header_branch
          %687 = sbr.rel (%p685) target = $region433
        $region430: #{tpu_custom_call.1} parent=425 // loop_body
          %v691 = vld [vmem:[%s689] sm:%s682]
          %692 = vst [vmem:[%s690] sm:%s682] %v691
        $region431: #{tpu_custom_call.1} parent=425 // loop_footer
          %s688 = sadd.s32 1, %s684
        $region432: #{tpu_custom_call.1} parent=425 // loop_footer_branch
          %683 = sbr.rel target = $region428
        $region433: #{tpu_custom_call.1} parent=425 // loop_exit
          _
      $region426: #{tpu_custom_call.1} parent=410 // pred_fallthru
        _
    $region411: #{tpu_custom_call.1} parent=1 // pred_fallthru
      _
    // Predicated region
    $region412: #{tpu_custom_call.1} parent=1 // pred_check
      %p658 = pneg %p654
    $region413: #{tpu_custom_call.1} parent=1 // pred_check_branch
      %660 = sbr.rel (%p658) target = $region415
    $region414: #{tpu_custom_call.1} parent=1 // pred_region
      %s661 = sshllo.u32 0, 1
      loop: start=0, step=1, limit=1
      $region416: #{tpu_custom_call.1} parent=414 // loop_pre_header
        _
      $region417: #{tpu_custom_call.1} parent=414 // loop_header
        %s663 = sphi 0, %s667
        %p664 = scmp.ge.s32.totalorder %s663, 1
        %s668 = sphi %s651, %s651
        %s669 = sphi %s652, %s652
      $region418: #{tpu_custom_call.1} parent=414 // loop_header_branch
        %666 = sbr.rel (%p664) target = $region422
      $region419: #{tpu_custom_call.1} parent=414 // loop_body
        %v670 = vld [vmem:[%s668] sm:%s661]
        %671 = vst [vmem:[%s669] sm:%s661] %v670
      $region420: #{tpu_custom_call.1} parent=414 // loop_footer
        %s667 = sadd.s32 1, %s663
      $region421: #{tpu_custom_call.1} parent=414 // loop_footer_branch
        %662 = sbr.rel target = $region417
      $region422: #{tpu_custom_call.1} parent=414 // loop_exit
        _
    $region415: #{tpu_custom_call.1} parent=1 // pred_fallthru
      _
    // Predicated region
    $region434: #{tpu_custom_call.1} parent=1 // pred_check
      _
    $region435: #{tpu_custom_call.1} parent=1 // pred_check_branch
      %695 = sbr.rel (0) target = $region437
    $region436: #{tpu_custom_call.1} parent=1 // pred_region
      %696 = vsyncadd [#allocation3], 16
    $region437: #{tpu_custom_call.1} parent=1 // pred_fallthru
      _
    %s697 = scalar_lea.vmem %s1, %s52
    %s698 = scalar_lea.vmem [#allocation2], 14
    %p700 = scmp.lt.u32.totalorder 1, 8
    %p701 = pneg %p700
    // Predicated region
    $region438: #{tpu_custom_call.1} parent=1 // pred_check
      _
    $region439: #{tpu_custom_call.1} parent=1 // pred_check_branch
      %703 = sbr.rel (%p700) target = $region441
    $region440: #{tpu_custom_call.1} parent=1 // pred_region
      %s718 = sand.u32 1, 7
      %p719 = scmp.eq.s32.totalorder %s718, 0
      %p720 = pneg %p719
      // Predicated region
      $region453: #{tpu_custom_call.1} parent=440 // pred_check
        _
      $region454: #{tpu_custom_call.1} parent=440 // pred_check_branch
        %722 = sbr.rel (%p719) target = $region456
      $region455: #{tpu_custom_call.1} parent=440 // pred_region
        %s723 = sand.u32 1, 7
        %s724 = ssub.s32 1, %s723
        %s725 = scalar_lea.vmem %s697, %s724
        %s726 = ssub.s32 1, %s723
        %s727 = scalar_lea.vmem %s698, %s726 [#allocation2]
        %s728 = sshllo.u32 0, %s723
        loop: start=0, step=1, limit=1
        $region457: #{tpu_custom_call.1} parent=455 // loop_pre_header
          _
        $region458: #{tpu_custom_call.1} parent=455 // loop_header
          %s730 = sphi 0, %s734
          %p731 = scmp.ge.s32.totalorder %s730, 1
          %s735 = sphi %s725, %s725
          %s736 = sphi %s727, %s727
        $region459: #{tpu_custom_call.1} parent=455 // loop_header_branch
          %733 = sbr.rel (%p731) target = $region463
        $region460: #{tpu_custom_call.1} parent=455 // loop_body
          %v737 = vld [vmem:[%s735] sm:%s728]
          %738 = vst [vmem:[%s736] sm:%s728] %v737
        $region461: #{tpu_custom_call.1} parent=455 // loop_footer
          %s734 = sadd.s32 1, %s730
        $region462: #{tpu_custom_call.1} parent=455 // loop_footer_branch
          %729 = sbr.rel target = $region458
        $region463: #{tpu_custom_call.1} parent=455 // loop_exit
          _
      $region456: #{tpu_custom_call.1} parent=440 // pred_fallthru
        _
    $region441: #{tpu_custom_call.1} parent=1 // pred_fallthru
      _
    // Predicated region
    $region442: #{tpu_custom_call.1} parent=1 // pred_check
      %p704 = pneg %p700
    $region443: #{tpu_custom_call.1} parent=1 // pred_check_branch
      %706 = sbr.rel (%p704) target = $region445
    $region444: #{tpu_custom_call.1} parent=1 // pred_region
      %s707 = sshllo.u32 0, 1
      loop: start=0, step=1, limit=1
      $region446: #{tpu_custom_call.1} parent=444 // loop_pre_header
        _
      $region447: #{tpu_custom_call.1} parent=444 // loop_header
        %s709 = sphi 0, %s713
        %p710 = scmp.ge.s32.totalorder %s709, 1
        %s714 = sphi %s697, %s697
        %s715 = sphi %s698, %s698
      $region448: #{tpu_custom_call.1} parent=444 // loop_header_branch
        %712 = sbr.rel (%p710) target = $region452
      $region449: #{tpu_custom_call.1} parent=444 // loop_body
        %v716 = vld [vmem:[%s714] sm:%s707]
        %717 = vst [vmem:[%s715] sm:%s707] %v716
      $region450: #{tpu_custom_call.1} parent=444 // loop_footer
        %s713 = sadd.s32 1, %s709
      $region451: #{tpu_custom_call.1} parent=444 // loop_footer_branch
        %708 = sbr.rel target = $region447
      $region452: #{tpu_custom_call.1} parent=444 // loop_exit
        _
    $region445: #{tpu_custom_call.1} parent=1 // pred_fallthru
      _
    // Predicated region
    $region464: #{tpu_custom_call.1} parent=1 // pred_check
      _
    $region465: #{tpu_custom_call.1} parent=1 // pred_check_branch
      %741 = sbr.rel (0) target = $region467
    $region466: #{tpu_custom_call.1} parent=1 // pred_region
      %742 = vsyncadd [#allocation3], 16
    $region467: #{tpu_custom_call.1} parent=1 // pred_fallthru
      _
    %s743 = scalar_lea.vmem %s1, %s53
    %s744 = scalar_lea.vmem [#allocation2], 15
    %p746 = scmp.lt.u32.totalorder 1, 8
    %p747 = pneg %p746
    // Predicated region
    $region468: #{tpu_custom_call.1} parent=1 // pred_check
      _
    $region469: #{tpu_custom_call.1} parent=1 // pred_check_branch
      %749 = sbr.rel (%p746) target = $region471
    $region470: #{tpu_custom_call.1} parent=1 // pred_region
      %s764 = sand.u32 1, 7
      %p765 = scmp.eq.s32.totalorder %s764, 0
      %p766 = pneg %p765
      // Predicated region
      $region483: #{tpu_custom_call.1} parent=470 // pred_check
        _
      $region484: #{tpu_custom_call.1} parent=470 // pred_check_branch
        %768 = sbr.rel (%p765) target = $region486
      $region485: #{tpu_custom_call.1} parent=470 // pred_region
        %s769 = sand.u32 1, 7
        %s770 = ssub.s32 1, %s769
        %s771 = scalar_lea.vmem %s743, %s770
        %s772 = ssub.s32 1, %s769
        %s773 = scalar_lea.vmem %s744, %s772 [#allocation2]
        %s774 = sshllo.u32 0, %s769
        loop: start=0, step=1, limit=1
        $region487: #{tpu_custom_call.1} parent=485 // loop_pre_header
          _
        $region488: #{tpu_custom_call.1} parent=485 // loop_header
          %s776 = sphi 0, %s780
          %p777 = scmp.ge.s32.totalorder %s776, 1
          %s781 = sphi %s771, %s771
          %s782 = sphi %s773, %s773
        $region489: #{tpu_custom_call.1} parent=485 // loop_header_branch
          %779 = sbr.rel (%p777) target = $region493
        $region490: #{tpu_custom_call.1} parent=485 // loop_body
          %v783 = vld [vmem:[%s781] sm:%s774]
          %784 = vst [vmem:[%s782] sm:%s774] %v783
        $region491: #{tpu_custom_call.1} parent=485 // loop_footer
          %s780 = sadd.s32 1, %s776
        $region492: #{tpu_custom_call.1} parent=485 // loop_footer_branch
          %775 = sbr.rel target = $region488
        $region493: #{tpu_custom_call.1} parent=485 // loop_exit
          _
      $region486: #{tpu_custom_call.1} parent=470 // pred_fallthru
        _
    $region471: #{tpu_custom_call.1} parent=1 // pred_fallthru
      _
    // Predicated region
    $region472: #{tpu_custom_call.1} parent=1 // pred_check
      %p750 = pneg %p746
    $region473: #{tpu_custom_call.1} parent=1 // pred_check_branch
      %752 = sbr.rel (%p750) target = $region475
    $region474: #{tpu_custom_call.1} parent=1 // pred_region
      %s753 = sshllo.u32 0, 1
      loop: start=0, step=1, limit=1
      $region476: #{tpu_custom_call.1} parent=474 // loop_pre_header
        _
      $region477: #{tpu_custom_call.1} parent=474 // loop_header
        %s755 = sphi 0, %s759
        %p756 = scmp.ge.s32.totalorder %s755, 1
        %s760 = sphi %s743, %s743
        %s761 = sphi %s744, %s744
      $region478: #{tpu_custom_call.1} parent=474 // loop_header_branch
        %758 = sbr.rel (%p756) target = $region482
      $region479: #{tpu_custom_call.1} parent=474 // loop_body
        %v762 = vld [vmem:[%s760] sm:%s753]
        %763 = vst [vmem:[%s761] sm:%s753] %v762
      $region480: #{tpu_custom_call.1} parent=474 // loop_footer
        %s759 = sadd.s32 1, %s755
      $region481: #{tpu_custom_call.1} parent=474 // loop_footer_branch
        %754 = sbr.rel target = $region477
      $region482: #{tpu_custom_call.1} parent=474 // loop_exit
        _
    $region475: #{tpu_custom_call.1} parent=1 // pred_fallthru
      _
    // Predicated region
    $region494: #{tpu_custom_call.1} parent=1 // pred_check
      _
    $region495: #{tpu_custom_call.1} parent=1 // pred_check_branch
      %787 = sbr.rel (0) target = $region497
    $region496: #{tpu_custom_call.1} parent=1 // pred_region
      %788 = vsyncadd [#allocation3], 16
    $region497: #{tpu_custom_call.1} parent=1 // pred_fallthru
      _
    %s789 = smul.u32 1, 1
    %s790 = sshll.u32 %s789, 4
    %791 = dma.done [#allocation3], %s790
    %s792 = sshll.u32 %s789, 4
    %793 = dma.done [#allocation3], %s792
    %s794 = sshll.u32 %s789, 4
    %795 = dma.done [#allocation3], %s794
    %s796 = sshll.u32 %s789, 4
    %797 = dma.done [#allocation3], %s796
    %s798 = sshll.u32 %s789, 4
    %799 = dma.done [#allocation3], %s798
    %s800 = sshll.u32 %s789, 4
    %801 = dma.done [#allocation3], %s800
    %s802 = sshll.u32 %s789, 4
    %803 = dma.done [#allocation3], %s802
    %s804 = sshll.u32 %s789, 4
    %805 = dma.done [#allocation3], %s804
    %s806 = sshll.u32 %s789, 4
    %807 = dma.done [#allocation3], %s806
    %s808 = sshll.u32 %s789, 4
    %809 = dma.done [#allocation3], %s808
    %s810 = sshll.u32 %s789, 4
    %811 = dma.done [#allocation3], %s810
    %s812 = sshll.u32 %s789, 4
    %813 = dma.done [#allocation3], %s812
    %s814 = sshll.u32 %s789, 4
    %815 = dma.done [#allocation3], %s814
    %s816 = sshll.u32 %s789, 4
    %817 = dma.done [#allocation3], %s816
    %s818 = sshll.u32 %s789, 4
    %819 = dma.done [#allocation3], %s818
    %s820 = sshll.u32 %s789, 4
    %821 = dma.done [#allocation3], %s820
    %v822 = vld [vmem:[%s2] sm:$0xff]
    %v823 = vld [vmem:[%s2 + $0x8] sm:$0xff]
    %v824 = vld [vmem:[#allocation2] sm:$0xff]
    %v825 = vld [vmem:[#allocation2 + $0x8] sm:$0xff]
    %v826 = vpack.c.bf16 %v825, %v824
    %v827 = vld [vmem:[#allocation6] sm:$0xf]
    %v828 = vld [vmem:[#allocation6 + $0x4] sm:$0xf]
    %v829 = vld [vmem:[#allocation6 + $0x8] sm:$0xf]
    %v830 = vld [vmem:[#allocation6 + $0xc] sm:$0xf]
    %v835 = vunpack.c.l.b16 %v827
    %v836 = vunpack.c.l.b16 %v828
    %v837 = vunpack.c.l.b16 %v829
    %v838 = vunpack.c.l.b16 %v830
    %v839 = vpack.c.b16 %v836, %v835
    %v840 = vpack.c.b16 %v838, %v837
    %vm843 = vcmask 261120
    %v845 = vsel %vm843, %v826, 0
    %847 = vmatprep.subr.bf16.mxu0 0
    %848 = vmatpush1.bf16.msra.mxu0 %v839
    %849 = vmatprep.subr.bf16.mxu0 0
    %850 = vmatpush1.bf16.msra.mxu0 %v840
    %851 = vmatprep.subr.bf16.mxu0 0
    %852 = vmatpush1.bf16.msra.mxu0 0
    %853 = vmatprep.subr.bf16.mxu0 0
    %854 = vmatpush1.bf16.msra.mxu0 0
    %855 = vmatprep.subr.bf16.mxu0 0
    %856 = vmatpush1.bf16.msra.mxu0 0
    %857 = vmatprep.subr.bf16.mxu0 0
    %858 = vmatpush1.bf16.msra.mxu0 0
    %859 = vmatprep.subr.bf16.mxu0 0
    %860 = vmatpush1.bf16.msra.mxu0 0
    %861 = vmatprep.subr.bf16.mxu0 0
    %862 = vmatpush1.bf16.msra.mxu0 0
    %863 = vmatprep.subr.bf16.mxu0 0
    %864 = vmatpush1.bf16.msra.mxu0 0
    %865 = vmatprep.subr.bf16.mxu0 0
    %866 = vmatpush1.bf16.msra.mxu0 0
    %867 = vmatprep.subr.bf16.mxu0 0
    %868 = vmatpush1.bf16.msra.mxu0 0
    %869 = vmatprep.subr.bf16.mxu0 0
    %870 = vmatpush1.bf16.msra.mxu0 0
    %871 = vmatprep.subr.bf16.mxu0 0
    %872 = vmatpush1.bf16.msra.mxu0 0
    %873 = vmatprep.subr.bf16.mxu0 0
    %874 = vmatpush1.bf16.msra.mxu0 0
    %875 = vmatprep.subr.bf16.mxu0 0
    %876 = vmatpush1.bf16.msra.mxu0 0
    %877 = vmatprep.subr.bf16.mxu0 0
    %878 = vmatpush1.bf16.msra.mxu0 0
    %879 = vmatprep.mubr.bf16.mxu0 0
    %880 = vmatmul.mubr.bf16.gmra.mrb[0].mxu0 %v845
    %v881 = vpop.f32.mrb[0].mxu0
    %v882 = vadd.f32 0.0, %v881
    %v883 = vpop.f32.mrb[0].mxu0
    %v884 = vpop.f32.mrb[0].mxu0
    %v885 = vadd.f32 0.0, %v884
    %v886 = vpop.f32.mrb[0].mxu0
    %887 = vdwg.mxu0
    %v888 = vld [vmem:[%s4] sm:$0x1]
    %v890 = vlaneseq
    %v891 = vshrl.u32 %v890, 7
    %v892 = vsub.s32 0, %v891
    %v893 = vrot.slane %v888, %v892
    %vm895 = vcmask 130048
    %v897 = vsel %vm895, %v822, 0
    %v900 = vsel %vm895, %v823, 0
    %902 = vmatprep.subr.mxu0 0.0
    %903 = vmatpush1.msra.mxu0 %v882
    %904 = vmatprep.subr.mxu0 0.0
    %905 = vmatpush1.msra.mxu0 %v885
    %906 = vmatprep.subr.mxu0 0.0
    %907 = vmatpush1.msra.mxu0 0.0
    %908 = vmatprep.subr.mxu0 0.0
    %909 = vmatpush1.msra.mxu0 0.0
    %910 = vmatprep.subr.mxu0 0.0
    %911 = vmatpush1.msra.mxu0 0.0
    %912 = vmatprep.subr.mxu0 0.0
    %913 = vmatpush1.msra.mxu0 0.0
    %914 = vmatprep.subr.mxu0 0.0
    %915 = vmatpush1.msra.mxu0 0.0
    %916 = vmatprep.subr.mxu0 0.0
    %917 = vmatpush1.msra.mxu0 0.0
    %918 = vmatprep.subr.mxu0 0.0
    %919 = vmatpush1.msra.mxu0 0.0
    %920 = vmatprep.subr.mxu0 0.0
    %921 = vmatpush1.msra.mxu0 0.0
    %922 = vmatprep.subr.mxu0 0.0
    %923 = vmatpush1.msra.mxu0 0.0
    %924 = vmatprep.subr.mxu0 0.0
    %925 = vmatpush1.msra.mxu0 0.0
    %926 = vmatprep.subr.mxu0 0.0
    %927 = vmatpush1.msra.mxu0 0.0
    %928 = vmatprep.subr.mxu0 0.0
    %929 = vmatpush1.msra.mxu0 0.0
    %930 = vmatprep.subr.mxu0 0.0
    %931 = vmatpush1.msra.mxu0 0.0
    %932 = vmatprep.subr.mxu0 0.0
    %933 = vmatpush1.msra.mxu0 0.0
    %934 = vmatprep.subr.mxu0 0.0
    %935 = vmatpush1.msra.mxu0 0.0
    %936 = vmatprep.subr.mxu0 0.0
    %937 = vmatpush1.msra.mxu0 0.0
    %938 = vmatprep.subr.mxu0 0.0
    %939 = vmatpush1.msra.mxu0 0.0
    %940 = vmatprep.subr.mxu0 0.0
    %941 = vmatpush1.msra.mxu0 0.0
    %942 = vmatprep.subr.mxu0 0.0
    %943 = vmatpush1.msra.mxu0 0.0
    %944 = vmatprep.subr.mxu0 0.0
    %945 = vmatpush1.msra.mxu0 0.0
    %946 = vmatprep.subr.mxu0 0.0
    %947 = vmatpush1.msra.mxu0 0.0
    %948 = vmatprep.subr.mxu0 0.0
    %949 = vmatpush1.msra.mxu0 0.0
    %950 = vmatprep.subr.mxu0 0.0
    %951 = vmatpush1.msra.mxu0 0.0
    %952 = vmatprep.subr.mxu0 0.0
    %953 = vmatpush1.msra.mxu0 0.0
    %954 = vmatprep.subr.mxu0 0.0
    %955 = vmatpush1.msra.mxu0 0.0
    %956 = vmatprep.subr.mxu0 0.0
    %957 = vmatpush1.msra.mxu0 0.0
    %958 = vmatprep.subr.mxu0 0.0
    %959 = vmatpush1.msra.mxu0 0.0
    %960 = vmatprep.subr.mxu0 0.0
    %961 = vmatpush1.msra.mxu0 0.0
    %962 = vmatprep.subr.mxu0 0.0
    %963 = vmatpush1.msra.mxu0 0.0
    %964 = vmatprep.subr.mxu0 0.0
    %965 = vmatpush1.msra.mxu0 0.0
    %966 = vmatprep.mubr.f32.mxu0 0.0
    %967 = vmatmul.mubr.f32.gmra.mrb[0].mxu0 %v897
    %v968 = vpop.f32.mrb[0].mxu0
    %v969 = vadd.f32 %v893, %v968
    %v970 = vpop.f32.mrb[0].mxu0
    %971 = vmatprep.mubr.f32.mxu0 0.0
    %972 = vmatmul.mubr.f32.gmra.mrb[0].mxu0 %v900
    %v973 = vpop.f32.mrb[0].mxu0
    %v974 = vadd.f32 %v893, %v973
    %v975 = vpop.f32.mrb[0].mxu0
    %976 = vdwg.mxu0
    %v977 = vmax.f32 %v969, 0.0
    %v978 = vmax.f32 %v974, 0.0
    %v979 = vpack.c.bf16 %v978, %v977
    %s980 = scalar_lea.vmem [#allocation6], 64
    %v981 = vld [vmem:[%s980] sm:$0xf]
    %v982 = vld [vmem:[%s980 + $0x4] sm:$0xf]
    %v983 = vld [vmem:[%s980 + $0x8] sm:$0xf]
    %v984 = vld [vmem:[%s980 + $0xc] sm:$0xf]
    %v985 = vld [vmem:[%s980 + $0x10] sm:$0xf]
    %v986 = vld [vmem:[%s980 + $0x14] sm:$0xf]
    %v987 = vld [vmem:[%s980 + $0x18] sm:$0xf]
    %v988 = vld [vmem:[%s980 + $0x1c] sm:$0xf]
    %v989 = vld [vmem:[%s980 + $0x20] sm:$0xf]
    %v990 = vld [vmem:[%s980 + $0x24] sm:$0xf]
    %v991 = vld [vmem:[%s980 + $0x28] sm:$0xf]
    %v992 = vld [vmem:[%s980 + $0x2c] sm:$0xf]
    %v993 = vld [vmem:[%s980 + $0x30] sm:$0xf]
    %v994 = vld [vmem:[%s980 + $0x34] sm:$0xf]
    %v995 = vld [vmem:[%s980 + $0x38] sm:$0xf]
    %v996 = vld [vmem:[%s980 + $0x3c] sm:$0xf]
    %v1013 = vunpack.c.l.b16 %v981
    %v1014 = vunpack.c.l.b16 %v982
    %v1015 = vunpack.c.l.b16 %v983
    %v1016 = vunpack.c.l.b16 %v984
    %v1017 = vunpack.c.l.b16 %v985
    %v1018 = vunpack.c.l.b16 %v986
    %v1019 = vunpack.c.l.b16 %v987
    %v1020 = vunpack.c.l.b16 %v988
    %v1021 = vunpack.c.l.b16 %v989
    %v1022 = vunpack.c.l.b16 %v990
    %v1023 = vunpack.c.l.b16 %v991
    %v1024 = vunpack.c.l.b16 %v992
    %v1025 = vunpack.c.l.b16 %v993
    %v1026 = vunpack.c.l.b16 %v994
    %v1027 = vunpack.c.l.b16 %v995
    %v1028 = vunpack.c.l.b16 %v996
    %v1029 = vpack.c.b16 %v1014, %v1013
    %v1030 = vpack.c.b16 %v1016, %v1015
    %v1031 = vpack.c.b16 %v1018, %v1017
    %v1032 = vpack.c.b16 %v1020, %v1019
    %v1033 = vpack.c.b16 %v1022, %v1021
    %v1034 = vpack.c.b16 %v1024, %v1023
    %v1035 = vpack.c.b16 %v1026, %v1025
    %v1036 = vpack.c.b16 %v1028, %v1027
    %1045 = vmatprep.subr.bf16.mxu0 0
    %1046 = vmatpush1.bf16.msra.mxu0 %v1029
    %1047 = vmatprep.subr.bf16.mxu0 0
    %1048 = vmatpush1.bf16.msra.mxu0 %v1030
    %1049 = vmatprep.subr.bf16.mxu0 0
    %1050 = vmatpush1.bf16.msra.mxu0 %v1031
    %1051 = vmatprep.subr.bf16.mxu0 0
    %1052 = vmatpush1.bf16.msra.mxu0 %v1032
    %1053 = vmatprep.subr.bf16.mxu0 0
    %1054 = vmatpush1.bf16.msra.mxu0 %v1033
    %1055 = vmatprep.subr.bf16.mxu0 0
    %1056 = vmatpush1.bf16.msra.mxu0 %v1034
    %1057 = vmatprep.subr.bf16.mxu0 0
    %1058 = vmatpush1.bf16.msra.mxu0 %v1035
    %1059 = vmatprep.subr.bf16.mxu0 0
    %1060 = vmatpush1.bf16.msra.mxu0 %v1036
    %1061 = vmatprep.subr.bf16.mxu0 0
    %1062 = vmatpush1.bf16.msra.mxu0 0
    %1063 = vmatprep.subr.bf16.mxu0 0
    %1064 = vmatpush1.bf16.msra.mxu0 0
    %1065 = vmatprep.subr.bf16.mxu0 0
    %1066 = vmatpush1.bf16.msra.mxu0 0
    %1067 = vmatprep.subr.bf16.mxu0 0
    %1068 = vmatpush1.bf16.msra.mxu0 0
    %1069 = vmatprep.subr.bf16.mxu0 0
    %1070 = vmatpush1.bf16.msra.mxu0 0
    %1071 = vmatprep.subr.bf16.mxu0 0
    %1072 = vmatpush1.bf16.msra.mxu0 0
    %1073 = vmatprep.subr.bf16.mxu0 0
    %1074 = vmatpush1.bf16.msra.mxu0 0
    %1075 = vmatprep.subr.bf16.mxu0 0
    %1076 = vmatpush1.bf16.msra.mxu0 0
    %1077 = vmatprep.mubr.bf16.mxu0 0
    %1078 = vmatmul.mubr.bf16.gmra.mrb[0].mxu0 %v979
    %v1079 = vpop.f32.mrb[0].mxu0
    %v1080 = vadd.f32 0.0, %v1079
    %v1081 = vpop.f32.mrb[0].mxu0
    %v1082 = vpop.f32.mrb[0].mxu0
    %v1083 = vadd.f32 0.0, %v1082
    %v1084 = vpop.f32.mrb[0].mxu0
    %1085 = vdwg.mxu0
    %s1086 = scalar_lea.vmem %s4, 1
    %v1087 = vld [vmem:[%s1086] sm:$0x1]
    %v1089 = vlaneseq
    %v1090 = vshrl.u32 %v1089, 7
    %v1091 = vsub.s32 0, %v1090
    %v1092 = vrot.slane %v1087, %v1091
    %1094 = vmatprep.subr.mxu0 0.0
    %1095 = vmatpush1.msra.mxu0 %v1080
    %1096 = vmatprep.subr.mxu0 0.0
    %1097 = vmatpush1.msra.mxu0 %v1083
    %1098 = vmatprep.subr.mxu0 0.0
    %1099 = vmatpush1.msra.mxu0 0.0
    %1100 = vmatprep.subr.mxu0 0.0
    %1101 = vmatpush1.msra.mxu0 0.0
    %1102 = vmatprep.subr.mxu0 0.0
    %1103 = vmatpush1.msra.mxu0 0.0
    %1104 = vmatprep.subr.mxu0 0.0
    %1105 = vmatpush1.msra.mxu0 0.0
    %1106 = vmatprep.subr.mxu0 0.0
    %1107 = vmatpush1.msra.mxu0 0.0
    %1108 = vmatprep.subr.mxu0 0.0
    %1109 = vmatpush1.msra.mxu0 0.0
    %1110 = vmatprep.subr.mxu0 0.0
    %1111 = vmatpush1.msra.mxu0 0.0
    %1112 = vmatprep.subr.mxu0 0.0
    %1113 = vmatpush1.msra.mxu0 0.0
    %1114 = vmatprep.subr.mxu0 0.0
    %1115 = vmatpush1.msra.mxu0 0.0
    %1116 = vmatprep.subr.mxu0 0.0
    %1117 = vmatpush1.msra.mxu0 0.0
    %1118 = vmatprep.subr.mxu0 0.0
    %1119 = vmatpush1.msra.mxu0 0.0
    %1120 = vmatprep.subr.mxu0 0.0
    %1121 = vmatpush1.msra.mxu0 0.0
    %1122 = vmatprep.subr.mxu0 0.0
    %1123 = vmatpush1.msra.mxu0 0.0
    %1124 = vmatprep.subr.mxu0 0.0
    %1125 = vmatpush1.msra.mxu0 0.0
    %1126 = vmatprep.subr.mxu0 0.0
    %1127 = vmatpush1.msra.mxu0 0.0
    %1128 = vmatprep.subr.mxu0 0.0
    %1129 = vmatpush1.msra.mxu0 0.0
    %1130 = vmatprep.subr.mxu0 0.0
    %1131 = vmatpush1.msra.mxu0 0.0
    %1132 = vmatprep.subr.mxu0 0.0
    %1133 = vmatpush1.msra.mxu0 0.0
    %1134 = vmatprep.subr.mxu0 0.0
    %1135 = vmatpush1.msra.mxu0 0.0
    %1136 = vmatprep.subr.mxu0 0.0
    %1137 = vmatpush1.msra.mxu0 0.0
    %1138 = vmatprep.subr.mxu0 0.0
    %1139 = vmatpush1.msra.mxu0 0.0
    %1140 = vmatprep.subr.mxu0 0.0
    %1141 = vmatpush1.msra.mxu0 0.0
    %1142 = vmatprep.subr.mxu0 0.0
    %1143 = vmatpush1.msra.mxu0 0.0
    %1144 = vmatprep.subr.mxu0 0.0
    %1145 = vmatpush1.msra.mxu0 0.0
    %1146 = vmatprep.subr.mxu0 0.0
    %1147 = vmatpush1.msra.mxu0 0.0
    %1148 = vmatprep.subr.mxu0 0.0
    %1149 = vmatpush1.msra.mxu0 0.0
    %1150 = vmatprep.subr.mxu0 0.0
    %1151 = vmatpush1.msra.mxu0 0.0
    %1152 = vmatprep.subr.mxu0 0.0
    %1153 = vmatpush1.msra.mxu0 0.0
    %1154 = vmatprep.subr.mxu0 0.0
    %1155 = vmatpush1.msra.mxu0 0.0
    %1156 = vmatprep.subr.mxu0 0.0
    %1157 = vmatpush1.msra.mxu0 0.0
    %1158 = vmatprep.mubr.f32.mxu0 0.0
    %1159 = vmatmul.mubr.f32.gmra.mrb[0].mxu0 %v897
    %v1160 = vpop.f32.mrb[0].mxu0
    %v1161 = vadd.f32 %v1092, %v1160
    %v1162 = vpop.f32.mrb[0].mxu0
    %1163 = vmatprep.mubr.f32.mxu0 0.0
    %1164 = vmatmul.mubr.f32.gmra.mrb[0].mxu0 %v900
    %v1165 = vpop.f32.mrb[0].mxu0
    %v1166 = vadd.f32 %v1092, %v1165
    %v1167 = vpop.f32.mrb[0].mxu0
    %1168 = vdwg.mxu0
    %1169 = vst [vmem:[#allocation9] sm:$0xff] %v1161
    %1170 = vst [vmem:[#allocation9 + $0x8] sm:$0xff] %v1166
    // Predicated region
    $region498: #{tpu_custom_call.1} parent=1 // pred_check
      _
    $region499: #{tpu_custom_call.1} parent=1 // pred_check_branch
      %1172 = sbr.rel (0) target = $region501
    $region500: #{tpu_custom_call.1} parent=1 // pred_region
      %s1174 = ssub.s32 256, 256
      %1175 = vsyncadd [#allocation8], %s1174
      %s1176 = sshll.u32 [#allocation9], 4
      %s1177 = int_to_ptr.vmem [resolvable:$true] %s1176
      %1182 = dma.vmem_to_hbm [thread:$0]  %s1177, 256, %s5, [#allocation8], 128, 128, 8
    $region501: #{tpu_custom_call.1} parent=1 // pred_fallthru
      _
    // Predicated region
    $region502: #{tpu_custom_call.1} parent=1 // pred_check
      _
    $region503: #{tpu_custom_call.1} parent=1 // pred_check_branch
      %1184 = sbr.rel (0) target = $region505
    $region504: #{tpu_custom_call.1} parent=1 // pred_region
      %1185 = dma.done [#allocation8], 256
    $region505: #{tpu_custom_call.1} parent=1 // pred_fallthru
      _
    %1186 = vsyncpa [#allocation7], 1
    %1187 = vsyncpa [#allocation8], 1
  %1188 = vsyncmov [#allocation3]
  %s1189 = vpop.sfrf %1188
  %p1190 = scmp.eq.s32.totalorder %s1189, 0
  %p1191 = pneg %p1190
  %1193 = shalt.err (%p1191)

</llo_original>
